<compile_context>
chip_gen: v5e
topology: v5e:2x2
jax: 0.10.0
libtpu: 0.0.40
codegen_flags: <defaults>
</compile_context>

<pallas_src>
import functools

import jax
import jax.numpy as jnp
from jax import lax
from jax.experimental import pallas as pl
from jax.experimental.pallas import tpu as pltpu


# ----------------------------- glue helpers ---------------------------------

def _interp_matrix(in_size, out_size):
    """(out_size, in_size) matrix implementing 1-D linear upsample, align_corners=True."""
    # TODO(synk): guard in_size == 1 (upsample degenerates to a copy); asserted >= 2 below.
    pos = jnp.arange(out_size, dtype=jnp.float32) * (in_size - 1) / (out_size - 1)
    lo = jnp.clip(jnp.floor(pos).astype(jnp.int32), 0, in_size - 2)
    frac = pos - lo.astype(jnp.float32)
    base = jnp.arange(in_size, dtype=jnp.int32)[None, :]
    m_lo = (base == lo[:, None]).astype(jnp.float32)
    m_hi = (base == (lo + 1)[:, None]).astype(jnp.float32)
    return m_lo * (1.0 - frac)[:, None] + m_hi * frac[:, None]


def _upsample1d_align_corners(x, axis, factor=2):
    """Reference-only 1-D linear upsample (align_corners=True)."""
    in_size = x.shape[axis]
    out_size = in_size * factor
    pos = jnp.arange(out_size, dtype=jnp.float32) * (in_size - 1) / (out_size - 1)
    lo = jnp.clip(jnp.floor(pos).astype(jnp.int32), 0, in_size - 2)
    frac = pos - lo.astype(jnp.float32)
    x_lo = jnp.take(x, lo, axis=axis)
    x_hi = jnp.take(x, lo + 1, axis=axis)
    bshape = [1] * x.ndim
    bshape[axis] = out_size
    frac = frac.reshape(bshape)
    return x_lo * (1.0 - frac) + x_hi * frac


def _tap_masks(H2, W2):
    """(9, H2*W2) bf16 validity masks for the 9 (kh, kw) conv taps on the flat plane."""
    ii, jj = jnp.meshgrid(jnp.arange(H2), jnp.arange(W2), indexing="ij")
    rows = []
    for kh in range(3):
        for kw in range(3):
            dh, dw = kh - 1, kw - 1
            m = ((ii + dh >= 0) & (ii + dh < H2) & (jj + dw >= 0) & (jj + dw < W2))
            rows.append(m.reshape(-1))
    return jnp.stack(rows).astype(jnp.bfloat16)


# ------------------------------- kernel --------------------------------------

def _upconv_kernel(x_ref, mhw_ref, mask_ref, w_ref, b_ref, o_ref, *,
                   D, D2, H2, W2, Cin, Cout, L, dtile):
    # x_ref    : (D, Cin, H*W)      original-resolution input, one batch element (f32)
    # mhw_ref  : (H*W, L)           H/W upsample matrix, L = H2*W2 (f32)
    # mask_ref : (9, L)             per-(kh,kw) boundary masks (bf16 0/1)
    # w_ref    : (Cout, 27*Cin)     conv weights, K order = (kh, kw, kd, cin) (bf16)
    # b_ref    : (Cout, 1)          bias (f32)
    # o_ref    : (dtile, Cout, L)   output depth tile (lane-dense spatial)
    t = pl.program_id(1)
    d0 = t * dtile                      # first output depth of this tile
    scale_d = (D - 1) / (D2 - 1)        # align_corners=True depth mapping

    mhw = mhw_ref[...]
    wmat = w_ref[...]
    bias = b_ref[...]
    masks_all = mask_ref[...]
    tap_masks = [masks_all[k:k + 1, :] for k in range(9)]   # 9 x (1, L), hoisted

    def upsampled_plane(dz):
        # dz: traced output-depth index; out-of-range -> zeros (conv depth padding).
        valid = jnp.logical_and(dz >= 0, dz < D2).astype(jnp.float32)
        pos = dz.astype(jnp.float32) * scale_d
        lo = jnp.clip(jnp.floor(pos), 0.0, float(D - 2)).astype(jnp.int32)
        frac = pos - lo.astype(jnp.float32)
        x_lo = x_ref[lo].astype(jnp.float32)                # (Cin, H*W)
        x_hi = x_ref[lo + 1].astype(jnp.float32)
        a = (x_lo * (1.0 - frac) + x_hi * frac) * valid     # depth blend at input res
        # H/W upsample: one matmul against the interpolation matrix.
        return jnp.dot(a, mhw, preferred_element_type=jnp.float32)   # (Cin, L) f32

    # Rolling window of the 3 upsampled depth planes needed by the 3x3x3 conv.
    u_m1 = upsampled_plane(d0 - 1)
    u_0 = upsampled_plane(d0)
    for s in range(dtile):
        u_p1 = upsampled_plane(d0 + s + 1)
        # Stack the 3 depth planes: rows ordered (kd, cin).
        stack = jnp.concatenate([u_m1, u_0, u_p1], axis=0).astype(jnp.bfloat16)  # (3*Cin, L)
        # im2col via 9 lane shifts + boundary masks; K order = (kh, kw, kd, cin).
        pieces = []
        for kh in range(3):
            for kw in range(3):
                off = (kh - 1) * W2 + (kw - 1)
                shifted = stack if off == 0 else jnp.roll(stack, -off, axis=1)
                pieces.append(shifted * tap_masks[kh * 3 + kw])
        patches = jnp.concatenate(pieces, axis=0)            # (27*Cin, L) bf16
        # One MXU matmul per output depth slice: K = 27*Cin, lane-dense accumulator.
        acc = jnp.dot(wmat, patches, preferred_element_type=jnp.float32)  # (Cout, L) f32
        acc = jnp.maximum(acc + bias, 0.0)                   # bias + ReLU
        o_ref[s] = acc.astype(o_ref.dtype)
        u_m1, u_0 = u_0, u_p1


# ------------------------------- wrapper --------------------------------------

def upconv_forward(x, w, b):
    """UpConv.forward: trilinear x2 upsample (align_corners=True) -> Conv3d(3, pad=1) -> ReLU."""
    N, Cin, D, H, W = x.shape
    Cout = w.shape[0]
    assert min(D, H, W) >= 2, "spatial dims must be >= 2 (align_corners upsample)"
    D2, H2, W2 = 2 * D, 2 * H, 2 * W
    HW, L = H * W, H2 * W2
    dtile = 4 if D2 % 4 == 0 else 2     # D2 is always even
    T = D2 // dtile

    # Small precomputed operands (all at most a few hundred KB at these sizes).
    mhw_t = jnp.kron(_interp_matrix(H, H2), _interp_matrix(W, W2)).T   # (HW, L) f32
    masks = _tap_masks(H2, W2)                                          # (9, L) bf16
    w_mat = jnp.transpose(w, (0, 3, 4, 2, 1)).reshape(Cout, 27 * Cin).astype(jnp.bfloat16)
    b2 = b.reshape(Cout, 1).astype(jnp.float32)

    # Cheap layout plumbing on the ORIGINAL-resolution input only: NCDHW -> (N, D, Cin, H*W).
    x_r = jnp.transpose(x, (0, 2, 1, 3, 4)).reshape(N, D, Cin, HW)

    kernel = functools.partial(_upconv_kernel, D=D, D2=D2, H2=H2, W2=W2,
                               Cin=Cin, Cout=Cout, L=L, dtile=dtile)

    # TODO(synk): for very large H*W planes, additionally tile H2 into the grid.
    out = pl.pallas_call(
        kernel,
        out_shape=jax.ShapeDtypeStruct((N, D2, Cout, L), x.dtype),
        grid=(N, T),
        in_specs=[
            pl.BlockSpec((None, D, Cin, HW), lambda n, t: (n, 0, 0, 0)),
            pl.BlockSpec((HW, L), lambda n, t: (0, 0)),
            pl.BlockSpec((9, L), lambda n, t: (0, 0)),
            pl.BlockSpec((Cout, 27 * Cin), lambda n, t: (0, 0)),
            pl.BlockSpec((Cout, 1), lambda n, t: (0, 0)),
        ],
        out_specs=pl.BlockSpec((None, dtile, Cout, L), lambda n, t: (n, t, 0, 0)),
        compiler_params=pltpu.CompilerParams(
            dimension_semantics=("parallel", "parallel"),
            vmem_limit_bytes=32 * 1024 * 1024,
        ),
    )(x_r, mhw_t, masks, w_mat, b2)

    # Only small leading dims get permuted back to NCDHW; minor (H2, W2) stays intact.
    out = out.reshape(N, D2, Cout, H2, W2)
    return jnp.transpose(out, (0, 2, 1, 3, 4))


# --------------------------------- test ---------------------------------------

if __name__ == "__main__":
    key = jax.random.PRNGKey(0)
    kx, kw, kb = jax.random.split(key, 3)

    N, Cin, Cout, D, H, W = 2, 4, 8, 8, 8, 8
    x = jax.random.normal(kx, (N, Cin, D, H, W), dtype=jnp.float32)
    # Conv3d(in_ch, out_ch, kernel_size=3) parameters (deterministic synthetic init).
    w = 0.1 * jax.random.normal(kw, (Cout, Cin, 3, 3, 3), dtype=jnp.float32)
    b = 0.1 * jax.random.normal(kb, (Cout,), dtype=jnp.float32)

    out = jax.jit(upconv_forward)(x, w, b)
    out = jax.block_until_ready(out)
    assert out.shape == (N, Cout, 2 * D, 2 * H, 2 * W), out.shape

    # Reference in plain JAX/XLA (f32 throughout).
    x_up = x
    for axis in (2, 3, 4):
        x_up = _upsample1d_align_corners(x_up, axis)
    ref = lax.conv_general_dilated(
        x_up, w, window_strides=(1, 1, 1), padding="SAME",
        dimension_numbers=("NCDHW", "OIDHW", "NCDHW"))
    ref = jnp.maximum(ref + b.reshape(1, Cout, 1, 1, 1), 0.0)

    err = float(jnp.max(jnp.abs(out - ref)))
    # Kernel uses bf16 matmul operands (f32 accumulation); 5e-2 leaves ample margin.
    if not err < 5e-2:
        raise AssertionError(f"kernel/reference mismatch: max abs err = {err}")

    print("KERNEL_OK")
</pallas_src>

<mosaic_0001>
module attributes {stable_mosaic.version = 11 : i64} {
  func.func @_upconv_kernel(%arg0: i32, %arg1: i32, %arg2: memref<1x8x4x64xf32, #tpu.memory_space<vmem>>, %arg3: memref<64x256xf32, #tpu.memory_space<vmem>>, %arg4: memref<9x256xbf16, #tpu.memory_space<vmem>>, %arg5: memref<8x108xbf16, #tpu.memory_space<vmem>>, %arg6: memref<8x1xf32, #tpu.memory_space<vmem>>, %arg7: memref<1x4x8x256xf32, #tpu.memory_space<vmem>>) attributes {dimension_semantics = [#tpu.dimension_semantics<parallel>, #tpu.dimension_semantics<parallel>], iteration_bounds = array<i64: 2, 4>, scalar_prefetch = 0 : i64, scratch_operands = 0 : i64, tpu.core_type = #tpu.core_type<tc>, window_params = [{transform_indices = @transform_0, window_bounds = array<i64: 1, 8, 4, 64>}, {pipeline_mode = #tpu.pipeline_mode<synchronous>, transform_indices = @transform_1, window_bounds = array<i64: 64, 256>}, {pipeline_mode = #tpu.pipeline_mode<synchronous>, transform_indices = @transform_2, window_bounds = array<i64: 9, 256>}, {pipeline_mode = #tpu.pipeline_mode<synchronous>, transform_indices = @transform_3, window_bounds = array<i64: 8, 108>}, {pipeline_mode = #tpu.pipeline_mode<synchronous>, transform_indices = @transform_4, window_bounds = array<i64: 8, 1>}, {transform_indices = @transform_5, window_bounds = array<i64: 1, 4, 8, 256>}]} {
    %c4_i32 = arith.constant 4 : i32
    %0 = arith.muli %arg1, %c4_i32 : i32
    %c0 = arith.constant 0 : index
    %c0_0 = arith.constant 0 : index
    %1 = vector.load %arg3[%c0, %c0_0] : memref<64x256xf32, #tpu.memory_space<vmem>>, vector<64x256xf32>
    %c0_1 = arith.constant 0 : index
    %c0_2 = arith.constant 0 : index
    %2 = vector.load %arg5[%c0_1, %c0_2] : memref<8x108xbf16, #tpu.memory_space<vmem>>, vector<8x108xbf16>
    %c0_3 = arith.constant 0 : index
    %c0_4 = arith.constant 0 : index
    %3 = vector.load %arg6[%c0_3, %c0_4] : memref<8x1xf32, #tpu.memory_space<vmem>>, vector<8x1xf32>
    %c0_5 = arith.constant 0 : index
    %c0_6 = arith.constant 0 : index
    %4 = vector.load %arg4[%c0_5, %c0_6] : memref<9x256xbf16, #tpu.memory_space<vmem>>, vector<9x256xbf16>
    %5 = vector.extract_strided_slice %4 {offsets = [0, 0], sizes = [1, 256], strides = [1, 1]} : vector<9x256xbf16> to vector<1x256xbf16>
    %6 = vector.extract_strided_slice %4 {offsets = [1, 0], sizes = [1, 256], strides = [1, 1]} : vector<9x256xbf16> to vector<1x256xbf16>
    %7 = vector.extract_strided_slice %4 {offsets = [2, 0], sizes = [1, 256], strides = [1, 1]} : vector<9x256xbf16> to vector<1x256xbf16>
    %8 = vector.extract_strided_slice %4 {offsets = [3, 0], sizes = [1, 256], strides = [1, 1]} : vector<9x256xbf16> to vector<1x256xbf16>
    %9 = vector.extract_strided_slice %4 {offsets = [4, 0], sizes = [1, 256], strides = [1, 1]} : vector<9x256xbf16> to vector<1x256xbf16>
    %10 = vector.extract_strided_slice %4 {offsets = [5, 0], sizes = [1, 256], strides = [1, 1]} : vector<9x256xbf16> to vector<1x256xbf16>
    %11 = vector.extract_strided_slice %4 {offsets = [6, 0], sizes = [1, 256], strides = [1, 1]} : vector<9x256xbf16> to vector<1x256xbf16>
    %12 = vector.extract_strided_slice %4 {offsets = [7, 0], sizes = [1, 256], strides = [1, 1]} : vector<9x256xbf16> to vector<1x256xbf16>
    %13 = vector.extract_strided_slice %4 {offsets = [8, 0], sizes = [1, 256], strides = [1, 1]} : vector<9x256xbf16> to vector<1x256xbf16>
    %c1_i32 = arith.constant 1 : i32
    %14 = arith.subi %0, %c1_i32 : i32
    %c0_i32 = arith.constant 0 : i32
    %15 = arith.cmpi sge, %14, %c0_i32 : i32
    %c16_i32 = arith.constant 16 : i32
    %16 = arith.cmpi slt, %14, %c16_i32 : i32
    %17 = arith.andi %15, %16 : i1
    %18 = arith.extui %17 : i1 to i32
    %19 = arith.sitofp %18 : i32 to f32
    %20 = arith.sitofp %14 : i32 to f32
    %cst = arith.constant 0.466666669 : f32
    %21 = arith.mulf %20, %cst : f32
    %22 = math.floor %21 : f32
    %cst_7 = arith.constant 0.000000e+00 : f32
    %cst_8 = arith.constant 6.000000e+00 : f32
    %23 = arith.maximumf %cst_7, %22 : f32
    %24 = arith.minimumf %cst_8, %23 : f32
    %25 = arith.fptosi %24 : f32 to i32
    %26 = arith.sitofp %25 : i32 to f32
    %27 = arith.subf %21, %26 : f32
    %c0_9 = arith.constant 0 : index
    %28 = arith.index_cast %25 : i32 to index
    %c0_10 = arith.constant 0 : index
    %c0_11 = arith.constant 0 : index
    %29 = vector.load %arg2[%c0_9, %28, %c0_10, %c0_11] : memref<1x8x4x64xf32, #tpu.memory_space<vmem>>, vector<1x1x4x64xf32>
    %30 = vector.shape_cast %29 : vector<1x1x4x64xf32> to vector<4x64xf32>
    %c1_i32_12 = arith.constant 1 : i32
    %31 = arith.addi %25, %c1_i32_12 : i32
    %c0_13 = arith.constant 0 : index
    %32 = arith.index_cast %31 : i32 to index
    %c0_14 = arith.constant 0 : index
    %c0_15 = arith.constant 0 : index
    %33 = vector.load %arg2[%c0_13, %32, %c0_14, %c0_15] : memref<1x8x4x64xf32, #tpu.memory_space<vmem>>, vector<1x1x4x64xf32>
    %34 = vector.shape_cast %33 : vector<1x1x4x64xf32> to vector<4x64xf32>
    %cst_16 = arith.constant 1.000000e+00 : f32
    %35 = arith.subf %cst_16, %27 : f32
    %36 = vector.broadcast %35 : f32 to vector<4x64xf32>
    %37 = arith.mulf %30, %36 : vector<4x64xf32>
    %38 = vector.broadcast %27 : f32 to vector<4x64xf32>
    %39 = arith.mulf %34, %38 : vector<4x64xf32>
    %40 = arith.addf %37, %39 : vector<4x64xf32>
    %41 = vector.broadcast %19 : f32 to vector<4x64xf32>
    %42 = arith.mulf %40, %41 : vector<4x64xf32>
    %cst_17 = arith.constant dense<0.000000e+00> : vector<4x256xf32>
    %43 = tpu.matmul %42, %1, %cst_17 {dimension_numbers = #tpu.dot_dimension_numbers<[1], [0], [0], [1], [0, 0, 1, 1], [], []>} : vector<4x64xf32>, vector<64x256xf32>, vector<4x256xf32> -> vector<4x256xf32>
    %c0_i32_18 = arith.constant 0 : i32
    %44 = arith.cmpi sge, %0, %c0_i32_18 : i32
    %c16_i32_19 = arith.constant 16 : i32
    %45 = arith.cmpi slt, %0, %c16_i32_19 : i32
    %46 = arith.andi %44, %45 : i1
    %47 = arith.extui %46 : i1 to i32
    %48 = arith.sitofp %47 : i32 to f32
    %49 = arith.sitofp %0 : i32 to f32
    %cst_20 = arith.constant 0.466666669 : f32
    %50 = arith.mulf %49, %cst_20 : f32
    %51 = math.floor %50 : f32
    %cst_21 = arith.constant 0.000000e+00 : f32
    %cst_22 = arith.constant 6.000000e+00 : f32
    %52 = arith.maximumf %cst_21, %51 : f32
    %53 = arith.minimumf %cst_22, %52 : f32
    %54 = arith.fptosi %53 : f32 to i32
    %55 = arith.sitofp %54 : i32 to f32
    %56 = arith.subf %50, %55 : f32
    %c0_23 = arith.constant 0 : index
    %57 = arith.index_cast %54 : i32 to index
    %c0_24 = arith.constant 0 : index
    %c0_25 = arith.constant 0 : index
    %58 = vector.load %arg2[%c0_23, %57, %c0_24, %c0_25] : memref<1x8x4x64xf32, #tpu.memory_space<vmem>>, vector<1x1x4x64xf32>
    %59 = vector.shape_cast %58 : vector<1x1x4x64xf32> to vector<4x64xf32>
    %c1_i32_26 = arith.constant 1 : i32
    %60 = arith.addi %54, %c1_i32_26 : i32
    %c0_27 = arith.constant 0 : index
    %61 = arith.index_cast %60 : i32 to index
    %c0_28 = arith.constant 0 : index
    %c0_29 = arith.constant 0 : index
    %62 = vector.load %arg2[%c0_27, %61, %c0_28, %c0_29] : memref<1x8x4x64xf32, #tpu.memory_space<vmem>>, vector<1x1x4x64xf32>
    %63 = vector.shape_cast %62 : vector<1x1x4x64xf32> to vector<4x64xf32>
    %cst_30 = arith.constant 1.000000e+00 : f32
    %64 = arith.subf %cst_30, %56 : f32
    %65 = vector.broadcast %64 : f32 to vector<4x64xf32>
    %66 = arith.mulf %59, %65 : vector<4x64xf32>
    %67 = vector.broadcast %56 : f32 to vector<4x64xf32>
    %68 = arith.mulf %63, %67 : vector<4x64xf32>
    %69 = arith.addf %66, %68 : vector<4x64xf32>
    %70 = vector.broadcast %48 : f32 to vector<4x64xf32>
    %71 = arith.mulf %69, %70 : vector<4x64xf32>
    %cst_31 = arith.constant dense<0.000000e+00> : vector<4x256xf32>
    %72 = tpu.matmul %71, %1, %cst_31 {dimension_numbers = #tpu.dot_dimension_numbers<[1], [0], [0], [1], [0, 0, 1, 1], [], []>} : vector<4x64xf32>, vector<64x256xf32>, vector<4x256xf32> -> vector<4x256xf32>
    %c0_i32_32 = arith.constant 0 : i32
    %73 = arith.addi %0, %c0_i32_32 : i32
    %c1_i32_33 = arith.constant 1 : i32
    %74 = arith.addi %73, %c1_i32_33 : i32
    %c0_i32_34 = arith.constant 0 : i32
    %75 = arith.cmpi sge, %74, %c0_i32_34 : i32
    %c16_i32_35 = arith.constant 16 : i32
    %76 = arith.cmpi slt, %74, %c16_i32_35 : i32
    %77 = arith.andi %75, %76 : i1
    %78 = arith.extui %77 : i1 to i32
    %79 = arith.sitofp %78 : i32 to f32
    %80 = arith.sitofp %74 : i32 to f32
    %cst_36 = arith.constant 0.466666669 : f32
    %81 = arith.mulf %80, %cst_36 : f32
    %82 = math.floor %81 : f32
    %cst_37 = arith.constant 0.000000e+00 : f32
    %cst_38 = arith.constant 6.000000e+00 : f32
    %83 = arith.maximumf %cst_37, %82 : f32
    %84 = arith.minimumf %cst_38, %83 : f32
    %85 = arith.fptosi %84 : f32 to i32
    %86 = arith.sitofp %85 : i32 to f32
    %87 = arith.subf %81, %86 : f32
    %c0_39 = arith.constant 0 : index
    %88 = arith.index_cast %85 : i32 to index
    %c0_40 = arith.constant 0 : index
    %c0_41 = arith.constant 0 : index
    %89 = vector.load %arg2[%c0_39, %88, %c0_40, %c0_41] : memref<1x8x4x64xf32, #tpu.memory_space<vmem>>, vector<1x1x4x64xf32>
    %90 = vector.shape_cast %89 : vector<1x1x4x64xf32> to vector<4x64xf32>
    %c1_i32_42 = arith.constant 1 : i32
    %91 = arith.addi %85, %c1_i32_42 : i32
    %c0_43 = arith.constant 0 : index
    %92 = arith.index_cast %91 : i32 to index
    %c0_44 = arith.constant 0 : index
    %c0_45 = arith.constant 0 : index
    %93 = vector.load %arg2[%c0_43, %92, %c0_44, %c0_45] : memref<1x8x4x64xf32, #tpu.memory_space<vmem>>, vector<1x1x4x64xf32>
    %94 = vector.shape_cast %93 : vector<1x1x4x64xf32> to vector<4x64xf32>
    %cst_46 = arith.constant 1.000000e+00 : f32
    %95 = arith.subf %cst_46, %87 : f32
    %96 = vector.broadcast %95 : f32 to vector<4x64xf32>
    %97 = arith.mulf %90, %96 : vector<4x64xf32>
    %98 = vector.broadcast %87 : f32 to vector<4x64xf32>
    %99 = arith.mulf %94, %98 : vector<4x64xf32>
    %100 = arith.addf %97, %99 : vector<4x64xf32>
    %101 = vector.broadcast %79 : f32 to vector<4x64xf32>
    %102 = arith.mulf %100, %101 : vector<4x64xf32>
    %cst_47 = arith.constant dense<0.000000e+00> : vector<4x256xf32>
    %103 = tpu.matmul %102, %1, %cst_47 {dimension_numbers = #tpu.dot_dimension_numbers<[1], [0], [0], [1], [0, 0, 1, 1], [], []>} : vector<4x64xf32>, vector<64x256xf32>, vector<4x256xf32> -> vector<4x256xf32>
    %104 = tpu.concatenate %43, %72, %103 in 0 : vector<4x256xf32>, vector<4x256xf32>, vector<4x256xf32> -> vector<12x256xf32>
    %105 = arith.truncf %104 : vector<12x256xf32> to vector<12x256xbf16>
    %106 = vector.extract_strided_slice %105 {offsets = [0, 239], sizes = [12, 17], strides = [1, 1]} : vector<12x256xbf16> to vector<12x17xbf16>
    %107 = vector.extract_strided_slice %105 {offsets = [0, 0], sizes = [12, 239], strides = [1, 1]} : vector<12x256xbf16> to vector<12x239xbf16>
    %108 = tpu.concatenate %106, %107 in 1 : vector<12x17xbf16>, vector<12x239xbf16> -> vector<12x256xbf16>
    %109 = vector.broadcast %5 : vector<1x256xbf16> to vector<12x256xbf16>
    %110 = arith.mulf %108, %109 : vector<12x256xbf16>
    %111 = vector.extract_strided_slice %105 {offsets = [0, 240], sizes = [12, 16], strides = [1, 1]} : vector<12x256xbf16> to vector<12x16xbf16>
    %112 = vector.extract_strided_slice %105 {offsets = [0, 0], sizes = [12, 240], strides = [1, 1]} : vector<12x256xbf16> to vector<12x240xbf16>
    %113 = tpu.concatenate %111, %112 in 1 : vector<12x16xbf16>, vector<12x240xbf16> -> vector<12x256xbf16>
    %114 = vector.broadcast %6 : vector<1x256xbf16> to vector<12x256xbf16>
    %115 = arith.mulf %113, %114 : vector<12x256xbf16>
    %116 = vector.extract_strided_slice %105 {offsets = [0, 241], sizes = [12, 15], strides = [1, 1]} : vector<12x256xbf16> to vector<12x15xbf16>
    %117 = vector.extract_strided_slice %105 {offsets = [0, 0], sizes = [12, 241], strides = [1, 1]} : vector<12x256xbf16> to vector<12x241xbf16>
    %118 = tpu.concatenate %116, %117 in 1 : vector<12x15xbf16>, vector<12x241xbf16> -> vector<12x256xbf16>
    %119 = vector.broadcast %7 : vector<1x256xbf16> to vector<12x256xbf16>
    %120 = arith.mulf %118, %119 : vector<12x256xbf16>
    %121 = vector.extract_strided_slice %105 {offsets = [0, 255], sizes = [12, 1], strides = [1, 1]} : vector<12x256xbf16> to vector<12x1xbf16>
    %122 = vector.extract_strided_slice %105 {offsets = [0, 0], sizes = [12, 255], strides = [1, 1]} : vector<12x256xbf16> to vector<12x255xbf16>
    %123 = tpu.concatenate %121, %122 in 1 : vector<12x1xbf16>, vector<12x255xbf16> -> vector<12x256xbf16>
    %124 = vector.broadcast %8 : vector<1x256xbf16> to vector<12x256xbf16>
    %125 = arith.mulf %123, %124 : vector<12x256xbf16>
    %126 = vector.broadcast %9 : vector<1x256xbf16> to vector<12x256xbf16>
    %127 = arith.mulf %105, %126 : vector<12x256xbf16>
    %128 = vector.extract_strided_slice %105 {offsets = [0, 1], sizes = [12, 255], strides = [1, 1]} : vector<12x256xbf16> to vector<12x255xbf16>
    %129 = vector.extract_strided_slice %105 {offsets = [0, 0], sizes = [12, 1], strides = [1, 1]} : vector<12x256xbf16> to vector<12x1xbf16>
    %130 = tpu.concatenate %128, %129 in 1 : vector<12x255xbf16>, vector<12x1xbf16> -> vector<12x256xbf16>
    %131 = vector.broadcast %10 : vector<1x256xbf16> to vector<12x256xbf16>
    %132 = arith.mulf %130, %131 : vector<12x256xbf16>
    %133 = vector.extract_strided_slice %105 {offsets = [0, 15], sizes = [12, 241], strides = [1, 1]} : vector<12x256xbf16> to vector<12x241xbf16>
    %134 = vector.extract_strided_slice %105 {offsets = [0, 0], sizes = [12, 15], strides = [1, 1]} : vector<12x256xbf16> to vector<12x15xbf16>
    %135 = tpu.concatenate %133, %134 in 1 : vector<12x241xbf16>, vector<12x15xbf16> -> vector<12x256xbf16>
    %136 = vector.broadcast %11 : vector<1x256xbf16> to vector<12x256xbf16>
    %137 = arith.mulf %135, %136 : vector<12x256xbf16>
    %138 = vector.extract_strided_slice %105 {offsets = [0, 16], sizes = [12, 240], strides = [1, 1]} : vector<12x256xbf16> to vector<12x240xbf16>
    %139 = vector.extract_strided_slice %105 {offsets = [0, 0], sizes = [12, 16], strides = [1, 1]} : vector<12x256xbf16> to vector<12x16xbf16>
    %140 = tpu.concatenate %138, %139 in 1 : vector<12x240xbf16>, vector<12x16xbf16> -> vector<12x256xbf16>
    %141 = vector.broadcast %12 : vector<1x256xbf16> to vector<12x256xbf16>
    %142 = arith.mulf %140, %141 : vector<12x256xbf16>
    %143 = vector.extract_strided_slice %105 {offsets = [0, 17], sizes = [12, 239], strides = [1, 1]} : vector<12x256xbf16> to vector<12x239xbf16>
    %144 = vector.extract_strided_slice %105 {offsets = [0, 0], sizes = [12, 17], strides = [1, 1]} : vector<12x256xbf16> to vector<12x17xbf16>
    %145 = tpu.concatenate %143, %144 in 1 : vector<12x239xbf16>, vector<12x17xbf16> -> vector<12x256xbf16>
    %146 = vector.broadcast %13 : vector<1x256xbf16> to vector<12x256xbf16>
    %147 = arith.mulf %145, %146 : vector<12x256xbf16>
    %148 = tpu.concatenate %110, %115, %120, %125, %127, %132, %137, %142, %147 in 0 : vector<12x256xbf16>, vector<12x256xbf16>, vector<12x256xbf16>, vector<12x256xbf16>, vector<12x256xbf16>, vector<12x256xbf16>, vector<12x256xbf16>, vector<12x256xbf16>, vector<12x256xbf16> -> vector<108x256xbf16>
    %cst_48 = arith.constant dense<0.000000e+00> : vector<8x256xf32>
    %149 = tpu.matmul %2, %148, %cst_48 {dimension_numbers = #tpu.dot_dimension_numbers<[1], [0], [0], [1], [0, 0, 1, 1], [], []>} : vector<8x108xbf16>, vector<108x256xbf16>, vector<8x256xf32> -> vector<8x256xf32>
    %150 = vector.broadcast %3 : vector<8x1xf32> to vector<8x256xf32>
    %151 = arith.addf %149, %150 : vector<8x256xf32>
    %cst_49 = arith.constant 0.000000e+00 : f32
    %152 = vector.broadcast %cst_49 : f32 to vector<8x256xf32>
    %153 = arith.maximumf %151, %152 : vector<8x256xf32>
    %c0_50 = arith.constant 0 : index
    %c0_51 = arith.constant 0 : index
    %c0_52 = arith.constant 0 : index
    %c0_53 = arith.constant 0 : index
    %154 = vector.load %arg7[%c0_50, %c0_51, %c0_52, %c0_53] : memref<1x4x8x256xf32, #tpu.memory_space<vmem>>, vector<1x1x8x256xf32>
    %155 = vector.shape_cast %154 : vector<1x1x8x256xf32> to vector<8x256xf32>
    %156 = vector.shape_cast %153 : vector<8x256xf32> to vector<1x1x8x256xf32>
    tpu.vector_store %arg7[%c0_50, %c0_51, %c0_52, %c0_53], %156 {strides = array<i32>} : memref<1x4x8x256xf32, #tpu.memory_space<vmem>>, vector<1x1x8x256xf32>,
    %c1_i32_54 = arith.constant 1 : i32
    %157 = arith.addi %0, %c1_i32_54 : i32
    %c1_i32_55 = arith.constant 1 : i32
    %158 = arith.addi %157, %c1_i32_55 : i32
    %c0_i32_56 = arith.constant 0 : i32
    %159 = arith.cmpi sge, %158, %c0_i32_56 : i32
    %c16_i32_57 = arith.constant 16 : i32
    %160 = arith.cmpi slt, %158, %c16_i32_57 : i32
    %161 = arith.andi %159, %160 : i1
    %162 = arith.extui %161 : i1 to i32
    %163 = arith.sitofp %162 : i32 to f32
    %164 = arith.sitofp %158 : i32 to f32
    %cst_58 = arith.constant 0.466666669 : f32
    %165 = arith.mulf %164, %cst_58 : f32
    %166 = math.floor %165 : f32
    %cst_59 = arith.constant 0.000000e+00 : f32
    %cst_60 = arith.constant 6.000000e+00 : f32
    %167 = arith.maximumf %cst_59, %166 : f32
    %168 = arith.minimumf %cst_60, %167 : f32
    %169 = arith.fptosi %168 : f32 to i32
    %170 = arith.sitofp %169 : i32 to f32
    %171 = arith.subf %165, %170 : f32
    %c0_61 = arith.constant 0 : index
    %172 = arith.index_cast %169 : i32 to index
    %c0_62 = arith.constant 0 : index
    %c0_63 = arith.constant 0 : index
    %173 = vector.load %arg2[%c0_61, %172, %c0_62, %c0_63] : memref<1x8x4x64xf32, #tpu.memory_space<vmem>>, vector<1x1x4x64xf32>
    %174 = vector.shape_cast %173 : vector<1x1x4x64xf32> to vector<4x64xf32>
    %c1_i32_64 = arith.constant 1 : i32
    %175 = arith.addi %169, %c1_i32_64 : i32
    %c0_65 = arith.constant 0 : index
    %176 = arith.index_cast %175 : i32 to index
    %c0_66 = arith.constant 0 : index
    %c0_67 = arith.constant 0 : index
    %177 = vector.load %arg2[%c0_65, %176, %c0_66, %c0_67] : memref<1x8x4x64xf32, #tpu.memory_space<vmem>>, vector<1x1x4x64xf32>
    %178 = vector.shape_cast %177 : vector<1x1x4x64xf32> to vector<4x64xf32>
    %cst_68 = arith.constant 1.000000e+00 : f32
    %179 = arith.subf %cst_68, %171 : f32
    %180 = vector.broadcast %179 : f32 to vector<4x64xf32>
    %181 = arith.mulf %174, %180 : vector<4x64xf32>
    %182 = vector.broadcast %171 : f32 to vector<4x64xf32>
    %183 = arith.mulf %178, %182 : vector<4x64xf32>
    %184 = arith.addf %181, %183 : vector<4x64xf32>
    %185 = vector.broadcast %163 : f32 to vector<4x64xf32>
    %186 = arith.mulf %184, %185 : vector<4x64xf32>
    %cst_69 = arith.constant dense<0.000000e+00> : vector<4x256xf32>
    %187 = tpu.matmul %186, %1, %cst_69 {dimension_numbers = #tpu.dot_dimension_numbers<[1], [0], [0], [1], [0, 0, 1, 1], [], []>} : vector<4x64xf32>, vector<64x256xf32>, vector<4x256xf32> -> vector<4x256xf32>
    %188 = tpu.concatenate %72, %103, %187 in 0 : vector<4x256xf32>, vector<4x256xf32>, vector<4x256xf32> -> vector<12x256xf32>
    %189 = arith.truncf %188 : vector<12x256xf32> to vector<12x256xbf16>
    %190 = vector.extract_strided_slice %189 {offsets = [0, 239], sizes = [12, 17], strides = [1, 1]} : vector<12x256xbf16> to vector<12x17xbf16>
    %191 = vector.extract_strided_slice %189 {offsets = [0, 0], sizes = [12, 239], strides = [1, 1]} : vector<12x256xbf16> to vector<12x239xbf16>
    %192 = tpu.concatenate %190, %191 in 1 : vector<12x17xbf16>, vector<12x239xbf16> -> vector<12x256xbf16>
    %193 = vector.broadcast %5 : vector<1x256xbf16> to vector<12x256xbf16>
    %194 = arith.mulf %192, %193 : vector<12x256xbf16>
    %195 = vector.extract_strided_slice %189 {offsets = [0, 240], sizes = [12, 16], strides = [1, 1]} : vector<12x256xbf16> to vector<12x16xbf16>
    %196 = vector.extract_strided_slice %189 {offsets = [0, 0], sizes = [12, 240], strides = [1, 1]} : vector<12x256xbf16> to vector<12x240xbf16>
    %197 = tpu.concatenate %195, %196 in 1 : vector<12x16xbf16>, vector<12x240xbf16> -> vector<12x256xbf16>
    %198 = vector.broadcast %6 : vector<1x256xbf16> to vector<12x256xbf16>
    %199 = arith.mulf %197, %198 : vector<12x256xbf16>
    %200 = vector.extract_strided_slice %189 {offsets = [0, 241], sizes = [12, 15], strides = [1, 1]} : vector<12x256xbf16> to vector<12x15xbf16>
    %201 = vector.extract_strided_slice %189 {offsets = [0, 0], sizes = [12, 241], strides = [1, 1]} : vector<12x256xbf16> to vector<12x241xbf16>
    %202 = tpu.concatenate %200, %201 in 1 : vector<12x15xbf16>, vector<12x241xbf16> -> vector<12x256xbf16>
    %203 = vector.broadcast %7 : vector<1x256xbf16> to vector<12x256xbf16>
    %204 = arith.mulf %202, %203 : vector<12x256xbf16>
    %205 = vector.extract_strided_slice %189 {offsets = [0, 255], sizes = [12, 1], strides = [1, 1]} : vector<12x256xbf16> to vector<12x1xbf16>
    %206 = vector.extract_strided_slice %189 {offsets = [0, 0], sizes = [12, 255], strides = [1, 1]} : vector<12x256xbf16> to vector<12x255xbf16>
    %207 = tpu.concatenate %205, %206 in 1 : vector<12x1xbf16>, vector<12x255xbf16> -> vector<12x256xbf16>
    %208 = vector.broadcast %8 : vector<1x256xbf16> to vector<12x256xbf16>
    %209 = arith.mulf %207, %208 : vector<12x256xbf16>
    %210 = vector.broadcast %9 : vector<1x256xbf16> to vector<12x256xbf16>
    %211 = arith.mulf %189, %210 : vector<12x256xbf16>
    %212 = vector.extract_strided_slice %189 {offsets = [0, 1], sizes = [12, 255], strides = [1, 1]} : vector<12x256xbf16> to vector<12x255xbf16>
    %213 = vector.extract_strided_slice %189 {offsets = [0, 0], sizes = [12, 1], strides = [1, 1]} : vector<12x256xbf16> to vector<12x1xbf16>
    %214 = tpu.concatenate %212, %213 in 1 : vector<12x255xbf16>, vector<12x1xbf16> -> vector<12x256xbf16>
    %215 = vector.broadcast %10 : vector<1x256xbf16> to vector<12x256xbf16>
    %216 = arith.mulf %214, %215 : vector<12x256xbf16>
    %217 = vector.extract_strided_slice %189 {offsets = [0, 15], sizes = [12, 241], strides = [1, 1]} : vector<12x256xbf16> to vector<12x241xbf16>
    %218 = vector.extract_strided_slice %189 {offsets = [0, 0], sizes = [12, 15], strides = [1, 1]} : vector<12x256xbf16> to vector<12x15xbf16>
    %219 = tpu.concatenate %217, %218 in 1 : vector<12x241xbf16>, vector<12x15xbf16> -> vector<12x256xbf16>
    %220 = vector.broadcast %11 : vector<1x256xbf16> to vector<12x256xbf16>
    %221 = arith.mulf %219, %220 : vector<12x256xbf16>
    %222 = vector.extract_strided_slice %189 {offsets = [0, 16], sizes = [12, 240], strides = [1, 1]} : vector<12x256xbf16> to vector<12x240xbf16>
    %223 = vector.extract_strided_slice %189 {offsets = [0, 0], sizes = [12, 16], strides = [1, 1]} : vector<12x256xbf16> to vector<12x16xbf16>
    %224 = tpu.concatenate %222, %223 in 1 : vector<12x240xbf16>, vector<12x16xbf16> -> vector<12x256xbf16>
    %225 = vector.broadcast %12 : vector<1x256xbf16> to vector<12x256xbf16>
    %226 = arith.mulf %224, %225 : vector<12x256xbf16>
    %227 = vector.extract_strided_slice %189 {offsets = [0, 17], sizes = [12, 239], strides = [1, 1]} : vector<12x256xbf16> to vector<12x239xbf16>
    %228 = vector.extract_strided_slice %189 {offsets = [0, 0], sizes = [12, 17], strides = [1, 1]} : vector<12x256xbf16> to vector<12x17xbf16>
    %229 = tpu.concatenate %227, %228 in 1 : vector<12x239xbf16>, vector<12x17xbf16> -> vector<12x256xbf16>
    %230 = vector.broadcast %13 : vector<1x256xbf16> to vector<12x256xbf16>
    %231 = arith.mulf %229, %230 : vector<12x256xbf16>
    %232 = tpu.concatenate %194, %199, %204, %209, %211, %216, %221, %226, %231 in 0 : vector<12x256xbf16>, vector<12x256xbf16>, vector<12x256xbf16>, vector<12x256xbf16>, vector<12x256xbf16>, vector<12x256xbf16>, vector<12x256xbf16>, vector<12x256xbf16>, vector<12x256xbf16> -> vector<108x256xbf16>
    %cst_70 = arith.constant dense<0.000000e+00> : vector<8x256xf32>
    %233 = tpu.matmul %2, %232, %cst_70 {dimension_numbers = #tpu.dot_dimension_numbers<[1], [0], [0], [1], [0, 0, 1, 1], [], []>} : vector<8x108xbf16>, vector<108x256xbf16>, vector<8x256xf32> -> vector<8x256xf32>
    %234 = vector.broadcast %3 : vector<8x1xf32> to vector<8x256xf32>
    %235 = arith.addf %233, %234 : vector<8x256xf32>
    %cst_71 = arith.constant 0.000000e+00 : f32
    %236 = vector.broadcast %cst_71 : f32 to vector<8x256xf32>
    %237 = arith.maximumf %235, %236 : vector<8x256xf32>
    %c0_72 = arith.constant 0 : index
    %c1 = arith.constant 1 : index
    %c0_73 = arith.constant 0 : index
    %c0_74 = arith.constant 0 : index
    %238 = vector.load %arg7[%c0_72, %c1, %c0_73, %c0_74] : memref<1x4x8x256xf32, #tpu.memory_space<vmem>>, vector<1x1x8x256xf32>
    %239 = vector.shape_cast %238 : vector<1x1x8x256xf32> to vector<8x256xf32>
    %240 = vector.shape_cast %237 : vector<8x256xf32> to vector<1x1x8x256xf32>
    tpu.vector_store %arg7[%c0_72, %c1, %c0_73, %c0_74], %240 {strides = array<i32>} : memref<1x4x8x256xf32, #tpu.memory_space<vmem>>, vector<1x1x8x256xf32>,
    %c2_i32 = arith.constant 2 : i32
    %241 = arith.addi %0, %c2_i32 : i32
    %c1_i32_75 = arith.constant 1 : i32
    %242 = arith.addi %241, %c1_i32_75 : i32
    %c0_i32_76 = arith.constant 0 : i32
    %243 = arith.cmpi sge, %242, %c0_i32_76 : i32
    %c16_i32_77 = arith.constant 16 : i32
    %244 = arith.cmpi slt, %242, %c16_i32_77 : i32
    %245 = arith.andi %243, %244 : i1
    %246 = arith.extui %245 : i1 to i32
    %247 = arith.sitofp %246 : i32 to f32
    %248 = arith.sitofp %242 : i32 to f32
    %cst_78 = arith.constant 0.466666669 : f32
    %249 = arith.mulf %248, %cst_78 : f32
    %250 = math.floor %249 : f32
    %cst_79 = arith.constant 0.000000e+00 : f32
    %cst_80 = arith.constant 6.000000e+00 : f32
    %251 = arith.maximumf %cst_79, %250 : f32
    %252 = arith.minimumf %cst_80, %251 : f32
    %253 = arith.fptosi %252 : f32 to i32
    %254 = arith.sitofp %253 : i32 to f32
    %255 = arith.subf %249, %254 : f32
    %c0_81 = arith.constant 0 : index
    %256 = arith.index_cast %253 : i32 to index
    %c0_82 = arith.constant 0 : index
    %c0_83 = arith.constant 0 : index
    %257 = vector.load %arg2[%c0_81, %256, %c0_82, %c0_83] : memref<1x8x4x64xf32, #tpu.memory_space<vmem>>, vector<1x1x4x64xf32>
    %258 = vector.shape_cast %257 : vector<1x1x4x64xf32> to vector<4x64xf32>
    %c1_i32_84 = arith.constant 1 : i32
    %259 = arith.addi %253, %c1_i32_84 : i32
    %c0_85 = arith.constant 0 : index
    %260 = arith.index_cast %259 : i32 to index
    %c0_86 = arith.constant 0 : index
    %c0_87 = arith.constant 0 : index
    %261 = vector.load %arg2[%c0_85, %260, %c0_86, %c0_87] : memref<1x8x4x64xf32, #tpu.memory_space<vmem>>, vector<1x1x4x64xf32>
    %262 = vector.shape_cast %261 : vector<1x1x4x64xf32> to vector<4x64xf32>
    %cst_88 = arith.constant 1.000000e+00 : f32
    %263 = arith.subf %cst_88, %255 : f32
    %264 = vector.broadcast %263 : f32 to vector<4x64xf32>
    %265 = arith.mulf %258, %264 : vector<4x64xf32>
    %266 = vector.broadcast %255 : f32 to vector<4x64xf32>
    %267 = arith.mulf %262, %266 : vector<4x64xf32>
    %268 = arith.addf %265, %267 : vector<4x64xf32>
    %269 = vector.broadcast %247 : f32 to vector<4x64xf32>
    %270 = arith.mulf %268, %269 : vector<4x64xf32>
    %cst_89 = arith.constant dense<0.000000e+00> : vector<4x256xf32>
    %271 = tpu.matmul %270, %1, %cst_89 {dimension_numbers = #tpu.dot_dimension_numbers<[1], [0], [0], [1], [0, 0, 1, 1], [], []>} : vector<4x64xf32>, vector<64x256xf32>, vector<4x256xf32> -> vector<4x256xf32>
    %272 = tpu.concatenate %103, %187, %271 in 0 : vector<4x256xf32>, vector<4x256xf32>, vector<4x256xf32> -> vector<12x256xf32>
    %273 = arith.truncf %272 : vector<12x256xf32> to vector<12x256xbf16>
    %274 = vector.extract_strided_slice %273 {offsets = [0, 239], sizes = [12, 17], strides = [1, 1]} : vector<12x256xbf16> to vector<12x17xbf16>
    %275 = vector.extract_strided_slice %273 {offsets = [0, 0], sizes = [12, 239], strides = [1, 1]} : vector<12x256xbf16> to vector<12x239xbf16>
    %276 = tpu.concatenate %274, %275 in 1 : vector<12x17xbf16>, vector<12x239xbf16> -> vector<12x256xbf16>
    %277 = vector.broadcast %5 : vector<1x256xbf16> to vector<12x256xbf16>
    %278 = arith.mulf %276, %277 : vector<12x256xbf16>
    %279 = vector.extract_strided_slice %273 {offsets = [0, 240], sizes = [12, 16], strides = [1, 1]} : vector<12x256xbf16> to vector<12x16xbf16>
    %280 = vector.extract_strided_slice %273 {offsets = [0, 0], sizes = [12, 240], strides = [1, 1]} : vector<12x256xbf16> to vector<12x240xbf16>
    %281 = tpu.concatenate %279, %280 in 1 : vector<12x16xbf16>, vector<12x240xbf16> -> vector<12x256xbf16>
    %282 = vector.broadcast %6 : vector<1x256xbf16> to vector<12x256xbf16>
    %283 = arith.mulf %281, %282 : vector<12x256xbf16>
    %284 = vector.extract_strided_slice %273 {offsets = [0, 241], sizes = [12, 15], strides = [1, 1]} : vector<12x256xbf16> to vector<12x15xbf16>
    %285 = vector.extract_strided_slice %273 {offsets = [0, 0], sizes = [12, 241], strides = [1, 1]} : vector<12x256xbf16> to vector<12x241xbf16>
    %286 = tpu.concatenate %284, %285 in 1 : vector<12x15xbf16>, vector<12x241xbf16> -> vector<12x256xbf16>
    %287 = vector.broadcast %7 : vector<1x256xbf16> to vector<12x256xbf16>
    %288 = arith.mulf %286, %287 : vector<12x256xbf16>
    %289 = vector.extract_strided_slice %273 {offsets = [0, 255], sizes = [12, 1], strides = [1, 1]} : vector<12x256xbf16> to vector<12x1xbf16>
    %290 = vector.extract_strided_slice %273 {offsets = [0, 0], sizes = [12, 255], strides = [1, 1]} : vector<12x256xbf16> to vector<12x255xbf16>
    %291 = tpu.concatenate %289, %290 in 1 : vector<12x1xbf16>, vector<12x255xbf16> -> vector<12x256xbf16>
    %292 = vector.broadcast %8 : vector<1x256xbf16> to vector<12x256xbf16>
    %293 = arith.mulf %291, %292 : vector<12x256xbf16>
    %294 = vector.broadcast %9 : vector<1x256xbf16> to vector<12x256xbf16>
    %295 = arith.mulf %273, %294 : vector<12x256xbf16>
    %296 = vector.extract_strided_slice %273 {offsets = [0, 1], sizes = [12, 255], strides = [1, 1]} : vector<12x256xbf16> to vector<12x255xbf16>
    %297 = vector.extract_strided_slice %273 {offsets = [0, 0], sizes = [12, 1], strides = [1, 1]} : vector<12x256xbf16> to vector<12x1xbf16>
    %298 = tpu.concatenate %296, %297 in 1 : vector<12x255xbf16>, vector<12x1xbf16> -> vector<12x256xbf16>
    %299 = vector.broadcast %10 : vector<1x256xbf16> to vector<12x256xbf16>
    %300 = arith.mulf %298, %299 : vector<12x256xbf16>
    %301 = vector.extract_strided_slice %273 {offsets = [0, 15], sizes = [12, 241], strides = [1, 1]} : vector<12x256xbf16> to vector<12x241xbf16>
    %302 = vector.extract_strided_slice %273 {offsets = [0, 0], sizes = [12, 15], strides = [1, 1]} : vector<12x256xbf16> to vector<12x15xbf16>
    %303 = tpu.concatenate %301, %302 in 1 : vector<12x241xbf16>, vector<12x15xbf16> -> vector<12x256xbf16>
    %304 = vector.broadcast %11 : vector<1x256xbf16> to vector<12x256xbf16>
    %305 = arith.mulf %303, %304 : vector<12x256xbf16>
    %306 = vector.extract_strided_slice %273 {offsets = [0, 16], sizes = [12, 240], strides = [1, 1]} : vector<12x256xbf16> to vector<12x240xbf16>
    %307 = vector.extract_strided_slice %273 {offsets = [0, 0], sizes = [12, 16], strides = [1, 1]} : vector<12x256xbf16> to vector<12x16xbf16>
    %308 = tpu.concatenate %306, %307 in 1 : vector<12x240xbf16>, vector<12x16xbf16> -> vector<12x256xbf16>
    %309 = vector.broadcast %12 : vector<1x256xbf16> to vector<12x256xbf16>
    %310 = arith.mulf %308, %309 : vector<12x256xbf16>
    %311 = vector.extract_strided_slice %273 {offsets = [0, 17], sizes = [12, 239], strides = [1, 1]} : vector<12x256xbf16> to vector<12x239xbf16>
    %312 = vector.extract_strided_slice %273 {offsets = [0, 0], sizes = [12, 17], strides = [1, 1]} : vector<12x256xbf16> to vector<12x17xbf16>
    %313 = tpu.concatenate %311, %312 in 1 : vector<12x239xbf16>, vector<12x17xbf16> -> vector<12x256xbf16>
    %314 = vector.broadcast %13 : vector<1x256xbf16> to vector<12x256xbf16>
    %315 = arith.mulf %313, %314 : vector<12x256xbf16>
    %316 = tpu.concatenate %278, %283, %288, %293, %295, %300, %305, %310, %315 in 0 : vector<12x256xbf16>, vector<12x256xbf16>, vector<12x256xbf16>, vector<12x256xbf16>, vector<12x256xbf16>, vector<12x256xbf16>, vector<12x256xbf16>, vector<12x256xbf16>, vector<12x256xbf16> -> vector<108x256xbf16>
    %cst_90 = arith.constant dense<0.000000e+00> : vector<8x256xf32>
    %317 = tpu.matmul %2, %316, %cst_90 {dimension_numbers = #tpu.dot_dimension_numbers<[1], [0], [0], [1], [0, 0, 1, 1], [], []>} : vector<8x108xbf16>, vector<108x256xbf16>, vector<8x256xf32> -> vector<8x256xf32>
    %318 = vector.broadcast %3 : vector<8x1xf32> to vector<8x256xf32>
    %319 = arith.addf %317, %318 : vector<8x256xf32>
    %cst_91 = arith.constant 0.000000e+00 : f32
    %320 = vector.broadcast %cst_91 : f32 to vector<8x256xf32>
    %321 = arith.maximumf %319, %320 : vector<8x256xf32>
    %c0_92 = arith.constant 0 : index
    %c2 = arith.constant 2 : index
    %c0_93 = arith.constant 0 : index
    %c0_94 = arith.constant 0 : index
    %322 = vector.load %arg7[%c0_92, %c2, %c0_93, %c0_94] : memref<1x4x8x256xf32, #tpu.memory_space<vmem>>, vector<1x1x8x256xf32>
    %323 = vector.shape_cast %322 : vector<1x1x8x256xf32> to vector<8x256xf32>
    %324 = vector.shape_cast %321 : vector<8x256xf32> to vector<1x1x8x256xf32>
    tpu.vector_store %arg7[%c0_92, %c2, %c0_93, %c0_94], %324 {strides = array<i32>} : memref<1x4x8x256xf32, #tpu.memory_space<vmem>>, vector<1x1x8x256xf32>,
    %c3_i32 = arith.constant 3 : i32
    %325 = arith.addi %0, %c3_i32 : i32
    %c1_i32_95 = arith.constant 1 : i32
    %326 = arith.addi %325, %c1_i32_95 : i32
    %c0_i32_96 = arith.constant 0 : i32
    %327 = arith.cmpi sge, %326, %c0_i32_96 : i32
    %c16_i32_97 = arith.constant 16 : i32
    %328 = arith.cmpi slt, %326, %c16_i32_97 : i32
    %329 = arith.andi %327, %328 : i1
    %330 = arith.extui %329 : i1 to i32
    %331 = arith.sitofp %330 : i32 to f32
    %332 = arith.sitofp %326 : i32 to f32
    %cst_98 = arith.constant 0.466666669 : f32
    %333 = arith.mulf %332, %cst_98 : f32
    %334 = math.floor %333 : f32
    %cst_99 = arith.constant 0.000000e+00 : f32
    %cst_100 = arith.constant 6.000000e+00 : f32
    %335 = arith.maximumf %cst_99, %334 : f32
    %336 = arith.minimumf %cst_100, %335 : f32
    %337 = arith.fptosi %336 : f32 to i32
    %338 = arith.sitofp %337 : i32 to f32
    %339 = arith.subf %333, %338 : f32
    %c0_101 = arith.constant 0 : index
    %340 = arith.index_cast %337 : i32 to index
    %c0_102 = arith.constant 0 : index
    %c0_103 = arith.constant 0 : index
    %341 = vector.load %arg2[%c0_101, %340, %c0_102, %c0_103] : memref<1x8x4x64xf32, #tpu.memory_space<vmem>>, vector<1x1x4x64xf32>
    %342 = vector.shape_cast %341 : vector<1x1x4x64xf32> to vector<4x64xf32>
    %c1_i32_104 = arith.constant 1 : i32
    %343 = arith.addi %337, %c1_i32_104 : i32
    %c0_105 = arith.constant 0 : index
    %344 = arith.index_cast %343 : i32 to index
    %c0_106 = arith.constant 0 : index
    %c0_107 = arith.constant 0 : index
    %345 = vector.load %arg2[%c0_105, %344, %c0_106, %c0_107] : memref<1x8x4x64xf32, #tpu.memory_space<vmem>>, vector<1x1x4x64xf32>
    %346 = vector.shape_cast %345 : vector<1x1x4x64xf32> to vector<4x64xf32>
    %cst_108 = arith.constant 1.000000e+00 : f32
    %347 = arith.subf %cst_108, %339 : f32
    %348 = vector.broadcast %347 : f32 to vector<4x64xf32>
    %349 = arith.mulf %342, %348 : vector<4x64xf32>
    %350 = vector.broadcast %339 : f32 to vector<4x64xf32>
    %351 = arith.mulf %346, %350 : vector<4x64xf32>
    %352 = arith.addf %349, %351 : vector<4x64xf32>
    %353 = vector.broadcast %331 : f32 to vector<4x64xf32>
    %354 = arith.mulf %352, %353 : vector<4x64xf32>
    %cst_109 = arith.constant dense<0.000000e+00> : vector<4x256xf32>
    %355 = tpu.matmul %354, %1, %cst_109 {dimension_numbers = #tpu.dot_dimension_numbers<[1], [0], [0], [1], [0, 0, 1, 1], [], []>} : vector<4x64xf32>, vector<64x256xf32>, vector<4x256xf32> -> vector<4x256xf32>
    %356 = tpu.concatenate %187, %271, %355 in 0 : vector<4x256xf32>, vector<4x256xf32>, vector<4x256xf32> -> vector<12x256xf32>
    %357 = arith.truncf %356 : vector<12x256xf32> to vector<12x256xbf16>
    %358 = vector.extract_strided_slice %357 {offsets = [0, 239], sizes = [12, 17], strides = [1, 1]} : vector<12x256xbf16> to vector<12x17xbf16>
    %359 = vector.extract_strided_slice %357 {offsets = [0, 0], sizes = [12, 239], strides = [1, 1]} : vector<12x256xbf16> to vector<12x239xbf16>
    %360 = tpu.concatenate %358, %359 in 1 : vector<12x17xbf16>, vector<12x239xbf16> -> vector<12x256xbf16>
    %361 = vector.broadcast %5 : vector<1x256xbf16> to vector<12x256xbf16>
    %362 = arith.mulf %360, %361 : vector<12x256xbf16>
    %363 = vector.extract_strided_slice %357 {offsets = [0, 240], sizes = [12, 16], strides = [1, 1]} : vector<12x256xbf16> to vector<12x16xbf16>
    %364 = vector.extract_strided_slice %357 {offsets = [0, 0], sizes = [12, 240], strides = [1, 1]} : vector<12x256xbf16> to vector<12x240xbf16>
    %365 = tpu.concatenate %363, %364 in 1 : vector<12x16xbf16>, vector<12x240xbf16> -> vector<12x256xbf16>
    %366 = vector.broadcast %6 : vector<1x256xbf16> to vector<12x256xbf16>
    %367 = arith.mulf %365, %366 : vector<12x256xbf16>
    %368 = vector.extract_strided_slice %357 {offsets = [0, 241], sizes = [12, 15], strides = [1, 1]} : vector<12x256xbf16> to vector<12x15xbf16>
    %369 = vector.extract_strided_slice %357 {offsets = [0, 0], sizes = [12, 241], strides = [1, 1]} : vector<12x256xbf16> to vector<12x241xbf16>
    %370 = tpu.concatenate %368, %369 in 1 : vector<12x15xbf16>, vector<12x241xbf16> -> vector<12x256xbf16>
    %371 = vector.broadcast %7 : vector<1x256xbf16> to vector<12x256xbf16>
    %372 = arith.mulf %370, %371 : vector<12x256xbf16>
    %373 = vector.extract_strided_slice %357 {offsets = [0, 255], sizes = [12, 1], strides = [1, 1]} : vector<12x256xbf16> to vector<12x1xbf16>
    %374 = vector.extract_strided_slice %357 {offsets = [0, 0], sizes = [12, 255], strides = [1, 1]} : vector<12x256xbf16> to vector<12x255xbf16>
    %375 = tpu.concatenate %373, %374 in 1 : vector<12x1xbf16>, vector<12x255xbf16> -> vector<12x256xbf16>
    %376 = vector.broadcast %8 : vector<1x256xbf16> to vector<12x256xbf16>
    %377 = arith.mulf %375, %376 : vector<12x256xbf16>
    %378 = vector.broadcast %9 : vector<1x256xbf16> to vector<12x256xbf16>
    %379 = arith.mulf %357, %378 : vector<12x256xbf16>
    %380 = vector.extract_strided_slice %357 {offsets = [0, 1], sizes = [12, 255], strides = [1, 1]} : vector<12x256xbf16> to vector<12x255xbf16>
    %381 = vector.extract_strided_slice %357 {offsets = [0, 0], sizes = [12, 1], strides = [1, 1]} : vector<12x256xbf16> to vector<12x1xbf16>
    %382 = tpu.concatenate %380, %381 in 1 : vector<12x255xbf16>, vector<12x1xbf16> -> vector<12x256xbf16>
    %383 = vector.broadcast %10 : vector<1x256xbf16> to vector<12x256xbf16>
    %384 = arith.mulf %382, %383 : vector<12x256xbf16>
    %385 = vector.extract_strided_slice %357 {offsets = [0, 15], sizes = [12, 241], strides = [1, 1]} : vector<12x256xbf16> to vector<12x241xbf16>
    %386 = vector.extract_strided_slice %357 {offsets = [0, 0], sizes = [12, 15], strides = [1, 1]} : vector<12x256xbf16> to vector<12x15xbf16>
    %387 = tpu.concatenate %385, %386 in 1 : vector<12x241xbf16>, vector<12x15xbf16> -> vector<12x256xbf16>
    %388 = vector.broadcast %11 : vector<1x256xbf16> to vector<12x256xbf16>
    %389 = arith.mulf %387, %388 : vector<12x256xbf16>
    %390 = vector.extract_strided_slice %357 {offsets = [0, 16], sizes = [12, 240], strides = [1, 1]} : vector<12x256xbf16> to vector<12x240xbf16>
    %391 = vector.extract_strided_slice %357 {offsets = [0, 0], sizes = [12, 16], strides = [1, 1]} : vector<12x256xbf16> to vector<12x16xbf16>
    %392 = tpu.concatenate %390, %391 in 1 : vector<12x240xbf16>, vector<12x16xbf16> -> vector<12x256xbf16>
    %393 = vector.broadcast %12 : vector<1x256xbf16> to vector<12x256xbf16>
    %394 = arith.mulf %392, %393 : vector<12x256xbf16>
    %395 = vector.extract_strided_slice %357 {offsets = [0, 17], sizes = [12, 239], strides = [1, 1]} : vector<12x256xbf16> to vector<12x239xbf16>
    %396 = vector.extract_strided_slice %357 {offsets = [0, 0], sizes = [12, 17], strides = [1, 1]} : vector<12x256xbf16> to vector<12x17xbf16>
    %397 = tpu.concatenate %395, %396 in 1 : vector<12x239xbf16>, vector<12x17xbf16> -> vector<12x256xbf16>
    %398 = vector.broadcast %13 : vector<1x256xbf16> to vector<12x256xbf16>
    %399 = arith.mulf %397, %398 : vector<12x256xbf16>
    %400 = tpu.concatenate %362, %367, %372, %377, %379, %384, %389, %394, %399 in 0 : vector<12x256xbf16>, vector<12x256xbf16>, vector<12x256xbf16>, vector<12x256xbf16>, vector<12x256xbf16>, vector<12x256xbf16>, vector<12x256xbf16>, vector<12x256xbf16>, vector<12x256xbf16> -> vector<108x256xbf16>
    %cst_110 = arith.constant dense<0.000000e+00> : vector<8x256xf32>
    %401 = tpu.matmul %2, %400, %cst_110 {dimension_numbers = #tpu.dot_dimension_numbers<[1], [0], [0], [1], [0, 0, 1, 1], [], []>} : vector<8x108xbf16>, vector<108x256xbf16>, vector<8x256xf32> -> vector<8x256xf32>
    %402 = vector.broadcast %3 : vector<8x1xf32> to vector<8x256xf32>
    %403 = arith.addf %401, %402 : vector<8x256xf32>
    %cst_111 = arith.constant 0.000000e+00 : f32
    %404 = vector.broadcast %cst_111 : f32 to vector<8x256xf32>
    %405 = arith.maximumf %403, %404 : vector<8x256xf32>
    %c0_112 = arith.constant 0 : index
    %c3 = arith.constant 3 : index
    %c0_113 = arith.constant 0 : index
    %c0_114 = arith.constant 0 : index
    %406 = vector.load %arg7[%c0_112, %c3, %c0_113, %c0_114] : memref<1x4x8x256xf32, #tpu.memory_space<vmem>>, vector<1x1x8x256xf32>
    %407 = vector.shape_cast %406 : vector<1x1x8x256xf32> to vector<8x256xf32>
    %408 = vector.shape_cast %405 : vector<8x256xf32> to vector<1x1x8x256xf32>
    tpu.vector_store %arg7[%c0_112, %c3, %c0_113, %c0_114], %408 {strides = array<i32>} : memref<1x4x8x256xf32, #tpu.memory_space<vmem>>, vector<1x1x8x256xf32>,
    return
  }
  func.func @transform_0(%arg0: i32, %arg1: i32) -> (i32, i32, i32, i32) {
    %c0_i32 = arith.constant 0 : i32
    %c0_i32_0 = arith.constant 0 : i32
    %c0_i32_1 = arith.constant 0 : i32
    %c0_i32_2 = arith.constant 0 : i32
    return %arg0, %c0_i32, %c0_i32_0, %c0_i32_1 : i32, i32, i32, i32
  }
  func.func @transform_1(%arg0: i32, %arg1: i32) -> (i32, i32) {
    %c0_i32 = arith.constant 0 : i32
    %c0_i32_0 = arith.constant 0 : i32
    %c0_i32_1 = arith.constant 0 : i32
    return %c0_i32, %c0_i32_0 : i32, i32
  }
  func.func @transform_2(%arg0: i32, %arg1: i32) -> (i32, i32) {
    %c0_i32 = arith.constant 0 : i32
    %c0_i32_0 = arith.constant 0 : i32
    %c0_i32_1 = arith.constant 0 : i32
    return %c0_i32, %c0_i32_0 : i32, i32
  }
  func.func @transform_3(%arg0: i32, %arg1: i32) -> (i32, i32) {
    %c0_i32 = arith.constant 0 : i32
    %c0_i32_0 = arith.constant 0 : i32
    %c0_i32_1 = arith.constant 0 : i32
    return %c0_i32, %c0_i32_0 : i32, i32
  }
  func.func @transform_4(%arg0: i32, %arg1: i32) -> (i32, i32) {
    %c0_i32 = arith.constant 0 : i32
    %c0_i32_0 = arith.constant 0 : i32
    %c0_i32_1 = arith.constant 0 : i32
    return %c0_i32, %c0_i32_0 : i32, i32
  }
  func.func @transform_5(%arg0: i32, %arg1: i32) -> (i32, i32, i32, i32) {
    %c0_i32 = arith.constant 0 : i32
    %c0_i32_0 = arith.constant 0 : i32
    %c0_i32_1 = arith.constant 0 : i32
    return %arg0, %arg1, %c0_i32, %c0_i32_0 : i32, i32, i32, i32
  }
}

</mosaic_0001>

<llo_original>
// kernel: upconv_forward.1
$region0: #{upconv_forward.1}
  #allocation0 [shape = 'u32[]', space=smem, size = 0x4, offset = 0x4, fixed_abs, tag = 'smem constant byte address 0x4 - core index']
  #allocation1 [shape = 'u32[72,128]{1,0:T(1,128)}', space=vmem, size = 0x9000, scoped, tag = 'internal scratch']
  %s0 = inlined_call_operand.vmem [shape: f32[2,8,4,64], index: 0, kind: input, shape index: {}]
  %s1 = inlined_call_operand.vmem [shape: f32[64,256], index: 1, kind: input, shape index: {}]
  %s2 = inlined_call_operand.vmem [shape: bf16[9,256], index: 2, kind: input, shape index: {}]
  %s3 = inlined_call_operand.vmem [shape: bf16[8,108], index: 3, kind: input, shape index: {}]
  %s4 = inlined_call_operand.vmem [shape: f32[8,1], index: 4, kind: input, shape index: {}]
  %s5 = inlined_call_operand.vmem [shape: f32[2,16,8,256], index: 5, kind: output, shape index: {}]
  %s6 = sld [smem:[#allocation0]]
  $region53: #{upconv_forward.1} parent=0
    _
  %s8 = ssub.s32 1, %s6
  %s9 = scalar_select 0, %s8, %s6
  loop: start=0, step=1, limit=10
  $region2: #{upconv_forward.1} parent=0 // loop_pre_header
    _
  $region3: #{upconv_forward.1} parent=0 // loop_header
    %s11 = sphi 0, %s15
    %p12 = scmp.ge.s32.totalorder %s11, 10
    %s18 = sphi 0, %s30
    %s19 = sphi 0, %s26
    %s20 = sphi 0, %s18
    %s21 = sphi 0, %s19
    %s22 = sphi 0, %s20
    %s23 = sphi 0, %s21
    %s33 = sphi 0, %s35
    %s36 = sphi 0, %s33
    %s37 = sphi 0, %s36
    %s53 = sphi 0, %s37
    %s57 = sphi 0, %s57
    %s59 = sphi 0, %s57
    %s60 = sphi 0, %s59
    %s74 = sphi 0, %s60
    %s78 = sphi 0, %s78
    %s80 = sphi 0, %s78
    %s81 = sphi 0, %s80
    %s95 = sphi 0, %s81
    %s99 = sphi 0, %s99
    %s101 = sphi 0, %s99
    %s102 = sphi 0, %s101
    %s116 = sphi 0, %s102
    %s120 = sphi 0, %s120
    %s122 = sphi 0, %s120
    %s123 = sphi 0, %s122
    %s137 = sphi 0, %s123
    %s145 = sphi 0, %s147
    %s148 = sphi 0, %s145
    %s149 = sphi 0, %s148
    %s165 = sphi 0, %s149
  $region4: #{upconv_forward.1} parent=0 // loop_header_branch
    %14 = sbr.rel (%p12) target = $region8
  $region5: #{upconv_forward.1} parent=0 // loop_body
    %s16 = ssub.s32 %s11, 1
    %s17 = ssub.s32 %s11, 2
    %s24 = sadd.s32 1, %s19
    %p25 = scmp.ge.s32.totalorder %s24, 4
    %s26 = scalar_select %p25, 0, %s24
    %s27 = sadd.s32 1, %s18
    %s28 = scalar_select %p25, %s27, %s18
    %p29 = scmp.ge.s32.totalorder %s28, 2
    %s30 = scalar_select %p29, 0, %s28
    %s31 = ssub.s32 %s18, %s30
    %p32 = scmp.eq.s32.totalorder %s31, 0
    %s34 = sadd.s32 %s33, 1
    %s35 = scalar_select %p32, %s33, %s34
    %p38 = pneg %p32
    %p39 = scmp.eq.s32.totalorder %s11, 7
    %p40 = por %p38, %p39
    %p41 = scmp.ne.s32.totalorder %s33, %s36
    %p42 = scmp.eq.s32.totalorder %s11, 0
    %p43 = por %p41, %p42
    %p44 = scmp.ne.s32.totalorder %s33, %s36
    %p45 = scmp.eq.s32.totalorder %s16, 7
    %p46 = por %p44, %p45
    %p47 = scmp.ne.s32.totalorder %s36, %s37
    %p48 = scmp.eq.s32.totalorder %s16, 0
    %p49 = por %p47, %p48
    %p50 = scmp.ne.s32.totalorder %s36, %s37
    %p51 = scmp.eq.s32.totalorder %s17, 7
    %p52 = por %p50, %p51
    %p54 = scmp.ne.s32.totalorder %s37, %s53
    %p55 = scmp.eq.s32.totalorder %s17, 0
    %p56 = por %p54, %p55
    %s58 = sadd.s32 %s57, 1
    %p61 = scmp.eq.s32.totalorder %s11, 7
    %p62 = scmp.ne.s32.totalorder %s57, %s59
    %p63 = scmp.eq.s32.totalorder %s11, 0
    %p64 = por %p62, %p63
    %p65 = scmp.ne.s32.totalorder %s57, %s59
    %p66 = scmp.eq.s32.totalorder %s16, 7
    %p67 = por %p65, %p66
    %p68 = scmp.ne.s32.totalorder %s59, %s60
    %p69 = scmp.eq.s32.totalorder %s16, 0
    %p70 = por %p68, %p69
    %p71 = scmp.ne.s32.totalorder %s59, %s60
    %p72 = scmp.eq.s32.totalorder %s17, 7
    %p73 = por %p71, %p72
    %p75 = scmp.ne.s32.totalorder %s60, %s74
    %p76 = scmp.eq.s32.totalorder %s17, 0
    %p77 = por %p75, %p76
    %s79 = sadd.s32 %s78, 1
    %p82 = scmp.eq.s32.totalorder %s11, 7
    %p83 = scmp.ne.s32.totalorder %s78, %s80
    %p84 = scmp.eq.s32.totalorder %s11, 0
    %p85 = por %p83, %p84
    %p86 = scmp.ne.s32.totalorder %s78, %s80
    %p87 = scmp.eq.s32.totalorder %s16, 7
    %p88 = por %p86, %p87
    %p89 = scmp.ne.s32.totalorder %s80, %s81
    %p90 = scmp.eq.s32.totalorder %s16, 0
    %p91 = por %p89, %p90
    %p92 = scmp.ne.s32.totalorder %s80, %s81
    %p93 = scmp.eq.s32.totalorder %s17, 7
    %p94 = por %p92, %p93
    %p96 = scmp.ne.s32.totalorder %s81, %s95
    %p97 = scmp.eq.s32.totalorder %s17, 0
    %p98 = por %p96, %p97
    %s100 = sadd.s32 %s99, 1
    %p103 = scmp.eq.s32.totalorder %s11, 7
    %p104 = scmp.ne.s32.totalorder %s99, %s101
    %p105 = scmp.eq.s32.totalorder %s11, 0
    %p106 = por %p104, %p105
    %p107 = scmp.ne.s32.totalorder %s99, %s101
    %p108 = scmp.eq.s32.totalorder %s16, 7
    %p109 = por %p107, %p108
    %p110 = scmp.ne.s32.totalorder %s101, %s102
    %p111 = scmp.eq.s32.totalorder %s16, 0
    %p112 = por %p110, %p111
    %p113 = scmp.ne.s32.totalorder %s101, %s102
    %p114 = scmp.eq.s32.totalorder %s17, 7
    %p115 = por %p113, %p114
    %p117 = scmp.ne.s32.totalorder %s102, %s116
    %p118 = scmp.eq.s32.totalorder %s17, 0
    %p119 = por %p117, %p118
    %s121 = sadd.s32 %s120, 1
    %p124 = scmp.eq.s32.totalorder %s11, 7
    %p125 = scmp.ne.s32.totalorder %s120, %s122
    %p126 = scmp.eq.s32.totalorder %s11, 0
    %p127 = por %p125, %p126
    %p128 = scmp.ne.s32.totalorder %s120, %s122
    %p129 = scmp.eq.s32.totalorder %s16, 7
    %p130 = por %p128, %p129
    %p131 = scmp.ne.s32.totalorder %s122, %s123
    %p132 = scmp.eq.s32.totalorder %s16, 0
    %p133 = por %p131, %p132
    %p134 = scmp.ne.s32.totalorder %s122, %s123
    %p135 = scmp.eq.s32.totalorder %s17, 7
    %p136 = por %p134, %p135
    %p138 = scmp.ne.s32.totalorder %s123, %s137
    %p139 = scmp.eq.s32.totalorder %s17, 0
    %p140 = por %p138, %p139
    %s141 = ssub.s32 %s18, %s30
    %s142 = ssub.s32 %s19, %s26
    %s143 = sor.u32 %s141, %s142
    %p144 = scmp.eq.s32.totalorder %s143, 0
    %s146 = sadd.s32 %s145, 1
    %s147 = scalar_select %p144, %s145, %s146
    %p150 = pneg %p144
    %p151 = scmp.eq.s32.totalorder %s11, 7
    %p152 = por %p150, %p151
    %p153 = scmp.ne.s32.totalorder %s145, %s148
    %p154 = scmp.eq.s32.totalorder %s11, 0
    %p155 = por %p153, %p154
    %p156 = scmp.ne.s32.totalorder %s145, %s148
    %p157 = scmp.eq.s32.totalorder %s16, 7
    %p158 = por %p156, %p157
    %p159 = scmp.ne.s32.totalorder %s148, %s149
    %p160 = scmp.eq.s32.totalorder %s16, 0
    %p161 = por %p159, %p160
    %p162 = scmp.ne.s32.totalorder %s148, %s149
    %p163 = scmp.eq.s32.totalorder %s17, 7
    %p164 = por %p162, %p163
    %p166 = scmp.ne.s32.totalorder %s149, %s165
    %p167 = scmp.eq.s32.totalorder %s17, 0
    %p168 = por %p166, %p167
    %p169 = scmp.le.s32.totalorder 1, %s11
    %p170 = scmp.lt.s32.totalorder %s11, 9
    %p171 = pnand %p169, %p170
    %p172 = pneg %p171
    // Predicated region
    $region9: #{upconv_forward.1} parent=5 // pred_check
      _
    $region10: #{upconv_forward.1} parent=5 // pred_check_branch
      %174 = sbr.rel (%p171) target = $region12
    $region11: #{upconv_forward.1} parent=5 // pred_region
      %s175 = ssub.s32 %s11, 1
      // Predicated region
      $region13: #{upconv_forward.1} parent=11 // pred_check
        %p176 = pneg %p70
      $region14: #{upconv_forward.1} parent=11 // pred_check_branch
        %178 = sbr.rel (%p176) target = $region16
      $region15: #{upconv_forward.1} parent=11 // pred_region
        _
      $region16: #{upconv_forward.1} parent=11 // pred_fallthru
        _
      // Predicated region
      $region17: #{upconv_forward.1} parent=11 // pred_check
        %p179 = pneg %p91
      $region18: #{upconv_forward.1} parent=11 // pred_check_branch
        %181 = sbr.rel (%p179) target = $region20
      $region19: #{upconv_forward.1} parent=11 // pred_region
        _
      $region20: #{upconv_forward.1} parent=11 // pred_fallthru
        _
      // Predicated region
      $region21: #{upconv_forward.1} parent=11 // pred_check
        %p182 = pneg %p112
      $region22: #{upconv_forward.1} parent=11 // pred_check_branch
        %184 = sbr.rel (%p182) target = $region24
      $region23: #{upconv_forward.1} parent=11 // pred_region
        _
      $region24: #{upconv_forward.1} parent=11 // pred_fallthru
        _
      // Predicated region
      $region25: #{upconv_forward.1} parent=11 // pred_check
        %p185 = pneg %p133
      $region26: #{upconv_forward.1} parent=11 // pred_check_branch
        %187 = sbr.rel (%p185) target = $region28
      $region27: #{upconv_forward.1} parent=11 // pred_region
        _
      $region28: #{upconv_forward.1} parent=11 // pred_fallthru
        _
    $region12: #{upconv_forward.1} parent=5 // pred_fallthru
      _
    %p188 = scmp.lt.s32.totalorder %s11, 8
    // Predicated region
    $region29: #{upconv_forward.1} parent=5 // pred_check
      %p189 = pneg %p188
    $region30: #{upconv_forward.1} parent=5 // pred_check_branch
      %191 = sbr.rel (%p189) target = $region32
    $region31: #{upconv_forward.1} parent=5 // pred_region
      // Predicated region
      $region33: #{upconv_forward.1} parent=31 // pred_check
        %p192 = pneg %p43
      $region34: #{upconv_forward.1} parent=31 // pred_check_branch
        %194 = sbr.rel (%p192) target = $region36
      $region35: #{upconv_forward.1} parent=31 // pred_region
        %p195 = scmp.lt.s32.totalorder %s18, 1
        %s196 = scalar_select %p195, %s18, 1
        %s197 = smul.addr %s196, 8
        %s198 = smul.addr %s197, 4
        %s199 = scalar_lea.vmem %s0, %s198
      $region36: #{upconv_forward.1} parent=31 // pred_fallthru
        _
    $region32: #{upconv_forward.1} parent=5 // pred_fallthru
      _
    %p200 = scmp.le.s32.totalorder 1, %s11
    %p201 = scmp.lt.s32.totalorder %s11, 9
    %p202 = pnand %p200, %p201
    %p203 = pneg %p202
    // Predicated region
    $region37: #{upconv_forward.1} parent=5 // pred_check
      _
    $region38: #{upconv_forward.1} parent=5 // pred_check_branch
      %205 = sbr.rel (%p202) target = $region40
    $region39: #{upconv_forward.1} parent=5 // pred_region
      %s206 = ssub.s32 %s11, 1
      %p207 = scmp.lt.s32.totalorder %s20, 1
      %s208 = scalar_select %p207, %s20, 1
      %s209 = smul.addr %s208, 8
      %s210 = smul.addr %s209, 4
      %s211 = scalar_lea.vmem %s0, %s210
      %p212 = pneg %p49
      %p213 = pneg %p46
      %p214 = pneg %p70
      %p215 = pneg %p67
      %p216 = pneg %p91
      %p217 = pneg %p88
      %p218 = pneg %p112
      %p219 = pneg %p109
      %p220 = pneg %p133
      %p221 = pneg %p130
      %p222 = pneg %p161
      %p223 = pneg %p158
      %s224 = smul.u32 4, %s21
      %p225 = scmp.lt.s32.totalorder %s20, 1
      %s226 = scalar_select %p225, %s20, 1
      %p227 = scmp.lt.s32.totalorder %s224, 15
      %s228 = scalar_select %p227, %s224, 15
      %s229 = smul.addr %s228, 2
      %s230 = smul.addr %s226, 32
      %s231 = sadd.s32 %s229, %s230
      %s232 = smul.addr %s231, 8
      %s233 = scalar_lea.vmem %s5, %s232
      %p234 = scmp.lt.s32.totalorder %s20, 1
      %s235 = scalar_select %p234, %s20, 1
      %s236 = smul.addr %s235, 8
      %s237 = smul.addr %s236, 4
      %s238 = scalar_lea.vmem %s0, %s237
      %s239 = smul.u32 4, %s21
      %p240 = scmp.lt.s32.totalorder %s20, 1
      %s241 = scalar_select %p240, %s20, 1
      %p242 = scmp.lt.s32.totalorder %s239, 15
      %s243 = scalar_select %p242, %s239, 15
      %s244 = smul.addr %s243, 2
      %s245 = smul.addr %s241, 32
      %s246 = sadd.s32 %s244, %s245
      %s247 = smul.addr %s246, 8
      %s248 = scalar_lea.vmem %s5, %s247
      %s249 = smul.u32 4, %s21
      %s251 = smul.u32 %s21, 4
      %v252 = vld [vmem:[%s1] sm:$0xff]
      %v253 = vld [vmem:[%s1 + $0x8] sm:$0xff]
      %v254 = vld [vmem:[%s1 + $0x10] sm:$0xff]
      %v255 = vld [vmem:[%s1 + $0x18] sm:$0xff]
      %v256 = vld [vmem:[%s1 + $0x20] sm:$0xff]
      %v257 = vld [vmem:[%s1 + $0x28] sm:$0xff]
      %v258 = vld [vmem:[%s1 + $0x30] sm:$0xff]
      %v259 = vld [vmem:[%s1 + $0x38] sm:$0xff]
      %v260 = vld [vmem:[%s1 + $0x40] sm:$0xff]
      %v261 = vld [vmem:[%s1 + $0x48] sm:$0xff]
      %v262 = vld [vmem:[%s1 + $0x50] sm:$0xff]
      %v263 = vld [vmem:[%s1 + $0x58] sm:$0xff]
      %v264 = vld [vmem:[%s1 + $0x60] sm:$0xff]
      %v265 = vld [vmem:[%s1 + $0x68] sm:$0xff]
      %v266 = vld [vmem:[%s1 + $0x70] sm:$0xff]
      %v267 = vld [vmem:[%s1 + $0x78] sm:$0xff]
      %v268 = vld [vmem:[%s3] sm:$0xf]
      %v269 = vld [vmem:[%s4] sm:$0xff]
      %v270 = vld [vmem:[%s2] sm:$0xff]
      %v271 = vld [vmem:[%s2 + $0x8] sm:$0x11]
      %s272 = ssub.s32 %s251, 1
      %p273 = scmp.ge.s32.totalorder %s272, 0
      %p274 = scmp.lt.s32.totalorder %s272, 16
      %p275 = pnand %p273, %p274
      %p276 = pneg %p275
      %s277 = scalar_select %p276, 1, 0
      %s278 = scvt.s32.f32 %s277
      %s279 = scvt.s32.f32 %s272
      %s280 = smul.f32 %s279, 0.46666667
      %s281 = sfloor.f32 %s280
      %s282 = smax.f32 %s281, 0.0
      %s283 = smin.f32 %s282, 6.0
      %s284 = scvt.f32.s32.to.zero.pseudo %s283
      %s285 = scvt.s32.f32 %s284
      %s286 = ssub.f32 %s280, %s285
      %s287 = smul.u32 %s284, 4
      %s288 = scalar_lea.vmem %s238, %s287
      %v289 = vld [vmem:[%s288] sm:$0xf]
      %s290 = sadd.s32 %s284, 1
      %s291 = smul.u32 %s290, 4
      %s292 = scalar_lea.vmem %s238, %s291
      %v293 = vld [vmem:[%s292] sm:$0xf]
      %s294 = ssub.f32 1.0, %s286
      %v295 = vstv %s294
      %v296 = vmul.f32 %v289, %v295
      %v297 = vstv %s286
      %v298 = vmul.f32 %v293, %v297
      %v299 = vadd.f32 %v296, %v298
      %v300 = vstv %s278
      %v301 = vmul.f32 %v299, %v300
      %vm302 = vcmask 523264
      %v304 = vsel %vm302, %v301, 0
      %306 = vmatpush.msra.mxu0 0.0
      %307 = vmatpush.msra.mxu0 0.0
      %308 = vmatpush.msra.mxu0 0.0
      %309 = vmatpush.msra.mxu0 0.0
      %310 = vmatpush.msra.mxu0 0.0
      %311 = vmatpush.msra.mxu0 0.0
      %312 = vmatpush.msra.mxu0 0.0
      %313 = vmatpush.msra.mxu0 0.0
      %314 = vmatpush.msra.mxu0 %v266
      %315 = vmatpush.msra.mxu0 %v264
      %316 = vmatpush.msra.mxu0 %v262
      %317 = vmatpush.msra.mxu0 %v260
      %318 = vmatpush.msra.mxu0 %v258
      %319 = vmatpush.msra.mxu0 %v256
      %320 = vmatpush.msra.mxu0 %v254
      %321 = vmatpush.msra.mxu0 %v252
      %322 = vmatmul.f32.gmra.mxu0 %v304
      %v323 = vpop.f32.mrf.mxu0
      %v324 = vadd.f32 0.0, %v323
      %325 = vdwg.mxu0
      %326 = vmatpush.msra.mxu0 0.0
      %327 = vmatpush.msra.mxu0 0.0
      %328 = vmatpush.msra.mxu0 0.0
      %329 = vmatpush.msra.mxu0 0.0
      %330 = vmatpush.msra.mxu0 0.0
      %331 = vmatpush.msra.mxu0 0.0
      %332 = vmatpush.msra.mxu0 0.0
      %333 = vmatpush.msra.mxu0 0.0
      %334 = vmatpush.msra.mxu0 %v267
      %335 = vmatpush.msra.mxu0 %v265
      %336 = vmatpush.msra.mxu0 %v263
      %337 = vmatpush.msra.mxu0 %v261
      %338 = vmatpush.msra.mxu0 %v259
      %339 = vmatpush.msra.mxu0 %v257
      %340 = vmatpush.msra.mxu0 %v255
      %341 = vmatpush.msra.mxu0 %v253
      %342 = vmatmul.f32.gmra.mxu0 %v304
      %v343 = vpop.f32.mrf.mxu0
      %v344 = vadd.f32 0.0, %v343
      %345 = vdwg.mxu0
      %p346 = scmp.ge.s32.totalorder %s251, 0
      %p347 = scmp.lt.s32.totalorder %s251, 16
      %p348 = pnand %p346, %p347
      %p349 = pneg %p348
      %s350 = scalar_select %p349, 1, 0
      %s351 = scvt.s32.f32 %s350
      %s352 = scvt.s32.f32 %s251
      %s353 = smul.f32 %s352, 0.46666667
      %s354 = sfloor.f32 %s353
      %s355 = smax.f32 %s354, 0.0
      %s356 = smin.f32 %s355, 6.0
      %s357 = scvt.f32.s32.to.zero.pseudo %s356
      %s358 = scvt.s32.f32 %s357
      %s359 = ssub.f32 %s353, %s358
      %s360 = smul.u32 %s357, 4
      %s361 = scalar_lea.vmem %s238, %s360
      %v362 = vld [vmem:[%s361] sm:$0xf]
      %s363 = sadd.s32 %s357, 1
      %s364 = smul.u32 %s363, 4
      %s365 = scalar_lea.vmem %s238, %s364
      %v366 = vld [vmem:[%s365] sm:$0xf]
      %s367 = ssub.f32 1.0, %s359
      %v368 = vstv %s367
      %v369 = vmul.f32 %v362, %v368
      %v370 = vstv %s359
      %v371 = vmul.f32 %v366, %v370
      %v372 = vadd.f32 %v369, %v371
      %v373 = vstv %s351
      %v374 = vmul.f32 %v372, %v373
      %v376 = vsel %vm302, %v374, 0
      %378 = vmatpush.msra.mxu0 0.0
      %379 = vmatpush.msra.mxu0 0.0
      %380 = vmatpush.msra.mxu0 0.0
      %381 = vmatpush.msra.mxu0 0.0
      %382 = vmatpush.msra.mxu0 0.0
      %383 = vmatpush.msra.mxu0 0.0
      %384 = vmatpush.msra.mxu0 0.0
      %385 = vmatpush.msra.mxu0 0.0
      %386 = vmatpush.msra.mxu0 %v266
      %387 = vmatpush.msra.mxu0 %v264
      %388 = vmatpush.msra.mxu0 %v262
      %389 = vmatpush.msra.mxu0 %v260
      %390 = vmatpush.msra.mxu0 %v258
      %391 = vmatpush.msra.mxu0 %v256
      %392 = vmatpush.msra.mxu0 %v254
      %393 = vmatpush.msra.mxu0 %v252
      %394 = vmatmul.f32.gmra.mxu0 %v376
      %v395 = vpop.f32.mrf.mxu0
      %v396 = vadd.f32 0.0, %v395
      %397 = vdwg.mxu0
      %398 = vmatpush.msra.mxu0 0.0
      %399 = vmatpush.msra.mxu0 0.0
      %400 = vmatpush.msra.mxu0 0.0
      %401 = vmatpush.msra.mxu0 0.0
      %402 = vmatpush.msra.mxu0 0.0
      %403 = vmatpush.msra.mxu0 0.0
      %404 = vmatpush.msra.mxu0 0.0
      %405 = vmatpush.msra.mxu0 0.0
      %406 = vmatpush.msra.mxu0 %v267
      %407 = vmatpush.msra.mxu0 %v265
      %408 = vmatpush.msra.mxu0 %v263
      %409 = vmatpush.msra.mxu0 %v261
      %410 = vmatpush.msra.mxu0 %v259
      %411 = vmatpush.msra.mxu0 %v257
      %412 = vmatpush.msra.mxu0 %v255
      %413 = vmatpush.msra.mxu0 %v253
      %414 = vmatmul.f32.gmra.mxu0 %v376
      %v415 = vpop.f32.mrf.mxu0
      %v416 = vadd.f32 0.0, %v415
      %417 = vdwg.mxu0
      %s418 = sadd.s32 %s251, 1
      %p419 = scmp.ge.s32.totalorder %s418, 0
      %p420 = scmp.lt.s32.totalorder %s418, 16
      %p421 = pnand %p419, %p420
      %p422 = pneg %p421
      %s423 = scalar_select %p422, 1, 0
      %s424 = scvt.s32.f32 %s423
      %s425 = scvt.s32.f32 %s418
      %s426 = smul.f32 %s425, 0.46666667
      %s427 = sfloor.f32 %s426
      %s428 = smax.f32 %s427, 0.0
      %s429 = smin.f32 %s428, 6.0
      %s430 = scvt.f32.s32.to.zero.pseudo %s429
      %s431 = scvt.s32.f32 %s430
      %s432 = ssub.f32 %s426, %s431
      %s433 = smul.u32 %s430, 4
      %s434 = scalar_lea.vmem %s238, %s433
      %v435 = vld [vmem:[%s434] sm:$0xf]
      %s436 = sadd.s32 %s430, 1
      %s437 = smul.u32 %s436, 4
      %s438 = scalar_lea.vmem %s238, %s437
      %v439 = vld [vmem:[%s438] sm:$0xf]
      %s440 = ssub.f32 1.0, %s432
      %v441 = vstv %s440
      %v442 = vmul.f32 %v435, %v441
      %v443 = vstv %s432
      %v444 = vmul.f32 %v439, %v443
      %v445 = vadd.f32 %v442, %v444
      %v446 = vstv %s424
      %v447 = vmul.f32 %v445, %v446
      %v449 = vsel %vm302, %v447, 0
      %451 = vmatpush.msra.mxu0 0.0
      %452 = vmatpush.msra.mxu0 0.0
      %453 = vmatpush.msra.mxu0 0.0
      %454 = vmatpush.msra.mxu0 0.0
      %455 = vmatpush.msra.mxu0 0.0
      %456 = vmatpush.msra.mxu0 0.0
      %457 = vmatpush.msra.mxu0 0.0
      %458 = vmatpush.msra.mxu0 0.0
      %459 = vmatpush.msra.mxu0 %v266
      %460 = vmatpush.msra.mxu0 %v264
      %461 = vmatpush.msra.mxu0 %v262
      %462 = vmatpush.msra.mxu0 %v260
      %463 = vmatpush.msra.mxu0 %v258
      %464 = vmatpush.msra.mxu0 %v256
      %465 = vmatpush.msra.mxu0 %v254
      %466 = vmatpush.msra.mxu0 %v252
      %467 = vmatmul.f32.gmra.mxu0 %v449
      %v468 = vpop.f32.mrf.mxu0
      %v469 = vadd.f32 0.0, %v468
      %470 = vdwg.mxu0
      %471 = vmatpush.msra.mxu0 0.0
      %472 = vmatpush.msra.mxu0 0.0
      %473 = vmatpush.msra.mxu0 0.0
      %474 = vmatpush.msra.mxu0 0.0
      %475 = vmatpush.msra.mxu0 0.0
      %476 = vmatpush.msra.mxu0 0.0
      %477 = vmatpush.msra.mxu0 0.0
      %478 = vmatpush.msra.mxu0 0.0
      %479 = vmatpush.msra.mxu0 %v267
      %480 = vmatpush.msra.mxu0 %v265
      %481 = vmatpush.msra.mxu0 %v263
      %482 = vmatpush.msra.mxu0 %v261
      %483 = vmatpush.msra.mxu0 %v259
      %484 = vmatpush.msra.mxu0 %v257
      %485 = vmatpush.msra.mxu0 %v255
      %486 = vmatpush.msra.mxu0 %v253
      %487 = vmatmul.f32.gmra.mxu0 %v449
      %v488 = vpop.f32.mrf.mxu0
      %v489 = vadd.f32 0.0, %v488
      %490 = vdwg.mxu0
      %v493 = vrot.slane %v396, 4
      %v494 = vrot.slane %v416, 4
      %vm497 = vcmask 1043456
      %v498 = vsel %vm497, %v324, %v493
      %v499 = vsel %vm497, %v344, %v494
      %v500 = vpack.c.bf16 %v499, %v498
      %v501 = vpack.c.bf16 %v489, %v469
      %v504 = vunpack.c.h.b16 %v500
      %v505 = vunpack.c.h.b16 %v501
      %v506 = vpack.c.b16 %v505, %v504
      %507 = vrot.lane.b32.xlu0 %v506, 17
      %v508 = vpop.permute.xlu0 %507
      %v509 = vunpack.c.l.b16 %v500
      %v510 = vunpack.c.l.b16 %v501
      %v511 = vpack.c.b16 %v510, %v509
      %512 = vrot.lane.b32.xlu0 %v511, 17
      %v513 = vpop.permute.xlu0 %512
      %vm514 = vcmask 138240
      %v515 = vsel %vm514, %v513, %v508
      %vm517 = vcmask 138240
      %v520 = vsel %vm517, %v508, %v513
      %v523 = vunpack.c.l.b16 %v270
      %v524 = vunpack.c.h.b16 %v270
      %v525 = vpack.c.b16 %v523, %v523
      %v526 = vpack.c.b16 %v524, %v524
      %v528 = vpack.i.b16 %v525, %v525
      %v530 = vperm.slane %v528, 0
      %v532 = vpack.i.b16 %v526, %v526
      %v534 = vperm.slane %v532, 0
      %v535 = vunpack.c.l.bf16 %v520
      %v536 = vunpack.c.l.bf16 %v515
      %v537 = vunpack.c.h.bf16 %v520
      %v538 = vunpack.c.h.bf16 %v515
      %v539 = vunpack.c.l.bf16 %v530
      %v540 = vunpack.c.l.bf16 %v534
      %v541 = vmul.f32 %v535, %v539
      %v542 = vmul.f32 %v536, %v540
      %v543 = vmul.f32 %v537, %v539
      %v544 = vmul.f32 %v538, %v540
      %v545 = vpack.c.bf16 %v542, %v541
      %v546 = vpack.c.bf16 %v544, %v543
      %547 = vrot.lane.b32.xlu0 %v506, 16
      %v548 = vpop.permute.xlu0 %547
      %549 = vrot.lane.b32.xlu0 %v511, 16
      %v550 = vpop.permute.xlu0 %549
      %vm551 = vcmask 130048
      %v552 = vsel %vm551, %v550, %v548
      %vm554 = vcmask 130048
      %v557 = vsel %vm554, %v548, %v550
      %v559 = vshrl.u32 %v525, 16
      %v560 = vpack.i.b16 %v559, %v559
      %v562 = vperm.slane %v560, 0
      %v563 = vshrl.u32 %v526, 16
      %v564 = vpack.i.b16 %v563, %v563
      %v566 = vperm.slane %v564, 0
      %v567 = vunpack.c.l.bf16 %v557
      %v568 = vunpack.c.l.bf16 %v552
      %v569 = vunpack.c.h.bf16 %v557
      %v570 = vunpack.c.h.bf16 %v552
      %v571 = vunpack.c.l.bf16 %v562
      %v572 = vunpack.c.l.bf16 %v566
      %v573 = vmul.f32 %v567, %v571
      %v574 = vmul.f32 %v568, %v572
      %v575 = vmul.f32 %v569, %v571
      %v576 = vmul.f32 %v570, %v572
      %v577 = vpack.c.bf16 %v574, %v573
      %v578 = vpack.c.bf16 %v576, %v575
      %579 = vrot.lane.b32.xlu0 %v506, 15
      %v580 = vpop.permute.xlu0 %579
      %581 = vrot.lane.b32.xlu0 %v511, 15
      %v582 = vpop.permute.xlu0 %581
      %vm583 = vcmask 121856
      %v584 = vsel %vm583, %v582, %v580
      %vm586 = vcmask 121856
      %v589 = vsel %vm586, %v580, %v582
      %v591 = vperm.slane %v528, 1
      %v592 = vperm.slane %v532, 1
      %v593 = vunpack.c.l.bf16 %v589
      %v594 = vunpack.c.l.bf16 %v584
      %v595 = vunpack.c.h.bf16 %v589
      %v596 = vunpack.c.h.bf16 %v584
      %v597 = vunpack.c.l.bf16 %v591
      %v598 = vunpack.c.l.bf16 %v592
      %v599 = vmul.f32 %v593, %v597
      %v600 = vmul.f32 %v594, %v598
      %v601 = vmul.f32 %v595, %v597
      %v602 = vmul.f32 %v596, %v598
      %v603 = vpack.c.bf16 %v600, %v599
      %v604 = vpack.c.bf16 %v602, %v601
      %605 = vrot.lane.b32.xlu0 %v506, 1
      %v606 = vpop.permute.xlu0 %605
      %607 = vrot.lane.b32.xlu0 %v511, 1
      %v608 = vpop.permute.xlu0 %607
      %vm609 = vcmask 7168
      %v610 = vsel %vm609, %v608, %v606
      %vm612 = vcmask 7168
      %v615 = vsel %vm612, %v606, %v608
      %v617 = vperm.slane %v560, 1
      %v618 = vperm.slane %v564, 1
      %v619 = vunpack.c.l.bf16 %v615
      %v620 = vunpack.c.l.bf16 %v610
      %v621 = vunpack.c.h.bf16 %v615
      %v622 = vunpack.c.h.bf16 %v610
      %v623 = vunpack.c.l.bf16 %v617
      %v624 = vunpack.c.l.bf16 %v618
      %v625 = vmul.f32 %v619, %v623
      %v626 = vmul.f32 %v620, %v624
      %v627 = vmul.f32 %v621, %v623
      %v628 = vmul.f32 %v622, %v624
      %v629 = vpack.c.bf16 %v626, %v625
      %v630 = vpack.c.bf16 %v628, %v627
      %v631 = vperm.slane %v528, 2
      %v632 = vperm.slane %v532, 2
      %v633 = vunpack.c.l.bf16 %v500
      %v634 = vunpack.c.h.bf16 %v500
      %v635 = vunpack.c.l.bf16 %v501
      %v636 = vunpack.c.h.bf16 %v501
      %v637 = vunpack.c.l.bf16 %v631
      %v638 = vunpack.c.l.bf16 %v632
      %v639 = vmul.f32 %v633, %v637
      %v640 = vmul.f32 %v634, %v638
      %v641 = vmul.f32 %v635, %v637
      %v642 = vmul.f32 %v636, %v638
      %v643 = vpack.c.bf16 %v640, %v639
      %v644 = vpack.c.bf16 %v642, %v641
      %645 = vrot.lane.b32.xlu0 %v511, 127
      %v646 = vpop.permute.xlu0 %645
      %647 = vrot.lane.b32.xlu0 %v506, 127
      %v648 = vpop.permute.xlu0 %647
      %vm649 = vcmask 1039360
      %v650 = vsel %vm649, %v646, %v648
      %vm652 = vcmask 1039360
      %v655 = vsel %vm652, %v648, %v646
      %v657 = vperm.slane %v560, 2
      %v658 = vperm.slane %v564, 2
      %v659 = vunpack.c.l.bf16 %v650
      %v660 = vunpack.c.l.bf16 %v655
      %v661 = vunpack.c.h.bf16 %v650
      %v662 = vunpack.c.h.bf16 %v655
      %v663 = vunpack.c.l.bf16 %v657
      %v664 = vunpack.c.l.bf16 %v658
      %v665 = vmul.f32 %v659, %v663
      %v666 = vmul.f32 %v660, %v664
      %v667 = vmul.f32 %v661, %v663
      %v668 = vmul.f32 %v662, %v664
      %v669 = vpack.c.bf16 %v666, %v665
      %v670 = vpack.c.bf16 %v668, %v667
      %671 = vrot.lane.b32.xlu0 %v511, 113
      %v672 = vpop.permute.xlu0 %671
      %673 = vrot.lane.b32.xlu0 %v506, 113
      %v674 = vpop.permute.xlu0 %673
      %vm675 = vcmask 924672
      %v676 = vsel %vm675, %v672, %v674
      %vm678 = vcmask 924672
      %v681 = vsel %vm678, %v674, %v672
      %v683 = vperm.slane %v528, 3
      %v684 = vperm.slane %v532, 3
      %v685 = vunpack.c.l.bf16 %v676
      %v686 = vunpack.c.l.bf16 %v681
      %v687 = vunpack.c.h.bf16 %v676
      %v688 = vunpack.c.h.bf16 %v681
      %v689 = vunpack.c.l.bf16 %v683
      %v690 = vunpack.c.l.bf16 %v684
      %v691 = vmul.f32 %v685, %v689
      %v692 = vmul.f32 %v686, %v690
      %v693 = vmul.f32 %v687, %v689
      %v694 = vmul.f32 %v688, %v690
      %v695 = vpack.c.bf16 %v692, %v691
      %v696 = vpack.c.bf16 %v694, %v693
      %697 = vrot.lane.b32.xlu0 %v511, 112
      %v698 = vpop.permute.xlu0 %697
      %699 = vrot.lane.b32.xlu0 %v506, 112
      %v700 = vpop.permute.xlu0 %699
      %vm701 = vcmask 916480
      %v702 = vsel %vm701, %v698, %v700
      %vm704 = vcmask 916480
      %v707 = vsel %vm704, %v700, %v698
      %v709 = vperm.slane %v560, 3
      %v710 = vperm.slane %v564, 3
      %v711 = vunpack.c.l.bf16 %v702
      %v712 = vunpack.c.l.bf16 %v707
      %v713 = vunpack.c.h.bf16 %v702
      %v714 = vunpack.c.h.bf16 %v707
      %v715 = vunpack.c.l.bf16 %v709
      %v716 = vunpack.c.l.bf16 %v710
      %v717 = vmul.f32 %v711, %v715
      %v718 = vmul.f32 %v712, %v716
      %v719 = vmul.f32 %v713, %v715
      %v720 = vmul.f32 %v714, %v716
      %v721 = vpack.c.bf16 %v718, %v717
      %v722 = vpack.c.bf16 %v720, %v719
      %723 = vrot.lane.b32.xlu0 %v511, 111
      %v724 = vpop.permute.xlu0 %723
      %725 = vrot.lane.b32.xlu0 %v506, 111
      %v726 = vpop.permute.xlu0 %725
      %vm727 = vcmask 908288
      %v728 = vsel %vm727, %v724, %v726
      %vm730 = vcmask 908288
      %v733 = vsel %vm730, %v726, %v724
      %v736 = vunpack.c.l.b16 %v271
      %v737 = vunpack.c.h.b16 %v271
      %v738 = vpack.c.b16 %v736, %v736
      %v739 = vpack.c.b16 %v737, %v737
      %v741 = vpack.i.b16 %v738, %v738
      %v743 = vperm.slane %v741, 0
      %v745 = vpack.i.b16 %v739, %v739
      %v747 = vperm.slane %v745, 0
      %v748 = vunpack.c.l.bf16 %v728
      %v749 = vunpack.c.l.bf16 %v733
      %v750 = vunpack.c.h.bf16 %v728
      %v751 = vunpack.c.h.bf16 %v733
      %v752 = vunpack.c.l.bf16 %v743
      %v753 = vunpack.c.l.bf16 %v747
      %v754 = vmul.f32 %v748, %v752
      %v755 = vmul.f32 %v749, %v753
      %v756 = vmul.f32 %v750, %v752
      %v757 = vmul.f32 %v751, %v753
      %v758 = vpack.c.bf16 %v755, %v754
      %v759 = vpack.c.bf16 %v757, %v756
      %v762 = vunpack.c.l.b16 %v545
      %v763 = vunpack.c.h.b16 %v545
      %v764 = vunpack.c.l.b16 %v546
      %v765 = vunpack.c.h.b16 %v546
      %v766 = vpack.c.b16 %v764, %v762
      %v767 = vpack.c.b16 %v765, %v763
      %v770 = vunpack.c.l.b16 %v577
      %v771 = vunpack.c.h.b16 %v577
      %v772 = vunpack.c.l.b16 %v578
      %v773 = vunpack.c.h.b16 %v578
      %v774 = vpack.c.b16 %v772, %v770
      %v775 = vpack.c.b16 %v773, %v771
      %v776 = vrot.slane %v774, 2
      %v777 = vrot.slane %v775, 2
      %v780 = vunpack.c.l.b16 %v603
      %v781 = vunpack.c.h.b16 %v603
      %v782 = vunpack.c.l.b16 %v604
      %v783 = vunpack.c.h.b16 %v604
      %v784 = vpack.c.b16 %v780, %v780
      %v785 = vpack.c.b16 %v781, %v781
      %v786 = vpack.c.b16 %v782, %v782
      %v787 = vpack.c.b16 %v783, %v783
      %v790 = vunpack.c.l.b16 %v629
      %v791 = vunpack.c.h.b16 %v629
      %v792 = vunpack.c.l.b16 %v630
      %v793 = vunpack.c.h.b16 %v630
      %v794 = vpack.c.b16 %v792, %v790
      %v795 = vpack.c.b16 %v793, %v791
      %v796 = vrot.slane %v794, 6
      %v797 = vrot.slane %v795, 6
      %v800 = vunpack.c.l.b16 %v643
      %v801 = vunpack.c.h.b16 %v643
      %v802 = vunpack.c.l.b16 %v644
      %v803 = vunpack.c.h.b16 %v644
      %v804 = vpack.c.b16 %v802, %v800
      %v805 = vpack.c.b16 %v803, %v801
      %v808 = vunpack.c.l.b16 %v669
      %v809 = vunpack.c.h.b16 %v669
      %v810 = vunpack.c.l.b16 %v670
      %v811 = vunpack.c.h.b16 %v670
      %v812 = vpack.c.b16 %v810, %v808
      %v813 = vpack.c.b16 %v811, %v809
      %v814 = vrot.slane %v812, 2
      %v815 = vrot.slane %v813, 2
      %v818 = vunpack.c.l.b16 %v695
      %v819 = vunpack.c.h.b16 %v695
      %v820 = vunpack.c.l.b16 %v696
      %v821 = vunpack.c.h.b16 %v696
      %v822 = vpack.c.b16 %v818, %v818
      %v823 = vpack.c.b16 %v819, %v819
      %v824 = vpack.c.b16 %v820, %v820
      %v825 = vpack.c.b16 %v821, %v821
      %v828 = vunpack.c.l.b16 %v721
      %v829 = vunpack.c.h.b16 %v721
      %v830 = vunpack.c.l.b16 %v722
      %v831 = vunpack.c.h.b16 %v722
      %v832 = vpack.c.b16 %v830, %v828
      %v833 = vpack.c.b16 %v831, %v829
      %v834 = vrot.slane %v832, 6
      %v835 = vrot.slane %v833, 6
      %v838 = vunpack.c.l.b16 %v758
      %v839 = vunpack.c.h.b16 %v758
      %v840 = vunpack.c.l.b16 %v759
      %v841 = vunpack.c.h.b16 %v759
      %v842 = vpack.c.b16 %v840, %v838
      %v843 = vpack.c.b16 %v841, %v839
      %vm844 = vcmask 1045504
      %v847 = vsel %vm844, %v766, %v776
      %v851 = vsel %vm844, %v767, %v777
      %v854 = vsel %vm497, %v776, %v784
      %v857 = vsel %vm497, %v777, %v785
      %vm859 = vcmask 1041408
      %v862 = vsel %vm859, %v786, %v796
      %v866 = vsel %vm859, %v787, %v797
      %v870 = vsel %vm844, %v804, %v814
      %v874 = vsel %vm844, %v805, %v815
      %v877 = vsel %vm497, %v814, %v822
      %v880 = vsel %vm497, %v815, %v823
      %v884 = vsel %vm859, %v824, %v834
      %v888 = vsel %vm859, %v825, %v835
      %891 = vset.pattern.permute.xlu0 0
      %892 = vperm.xlu0 %891, %v269
      %v893 = vpop.permute.xlu0 %892
      %vm895 = vcmask 883712
      %v897 = vsel %vm895, %v268, 0
      %v900 = vsel %vm844, %v842, 0
      %v903 = vsel %vm844, %v843, 0
      %905 = vmatpush.bf16.msra.mxu0 0
      %906 = vmatpush.bf16.msra.mxu0 %v900
      %907 = vmatpush.bf16.msra.mxu0 %v884
      %908 = vmatpush.bf16.msra.mxu0 %v877
      %909 = vmatpush.bf16.msra.mxu0 %v870
      %910 = vmatpush.bf16.msra.mxu0 %v862
      %911 = vmatpush.bf16.msra.mxu0 %v854
      %912 = vmatpush.bf16.msra.mxu0 %v847
      %913 = vmatmul.bf16.gmra.mxu0 %v897
      %v914 = vpop.f32.mrf.mxu0
      %v915 = vadd.f32 %v893, %v914
      %v916 = vpop.f32.mrf.mxu0
      %917 = vdwg.mxu0
      %918 = vmatpush.bf16.msra.mxu0 0
      %919 = vmatpush.bf16.msra.mxu0 %v903
      %920 = vmatpush.bf16.msra.mxu0 %v888
      %921 = vmatpush.bf16.msra.mxu0 %v880
      %922 = vmatpush.bf16.msra.mxu0 %v874
      %923 = vmatpush.bf16.msra.mxu0 %v866
      %924 = vmatpush.bf16.msra.mxu0 %v857
      %925 = vmatpush.bf16.msra.mxu0 %v851
      %926 = vmatmul.bf16.gmra.mxu0 %v897
      %v927 = vpop.f32.mrf.mxu0
      %v928 = vadd.f32 %v893, %v927
      %v929 = vpop.f32.mrf.mxu0
      %930 = vdwg.mxu0
      %v931 = vmax.f32 %v915, 0.0
      %v932 = vmax.f32 %v928, 0.0
      %933 = vst [vmem:[%s248] sm:$0xff] %v931
      %934 = vst [vmem:[%s248 + $0x8] sm:$0xff] %v932
      %s935 = sadd.s32 %s251, 2
      %p936 = scmp.ge.s32.totalorder %s935, 0
      %p937 = scmp.lt.s32.totalorder %s935, 16
      %p938 = pnand %p936, %p937
      %p939 = pneg %p938
      %s940 = scalar_select %p939, 1, 0
      %s941 = scvt.s32.f32 %s940
      %s942 = scvt.s32.f32 %s935
      %s943 = smul.f32 %s942, 0.46666667
      %s944 = sfloor.f32 %s943
      %s945 = smax.f32 %s944, 0.0
      %s946 = smin.f32 %s945, 6.0
      %s947 = scvt.f32.s32.to.zero.pseudo %s946
      %s948 = scvt.s32.f32 %s947
      %s949 = ssub.f32 %s943, %s948
      %s950 = smul.u32 %s947, 4
      %s951 = scalar_lea.vmem %s238, %s950
      %v952 = vld [vmem:[%s951] sm:$0xf]
      %s953 = sadd.s32 %s947, 1
      %s954 = smul.u32 %s953, 4
      %s955 = scalar_lea.vmem %s238, %s954
      %v956 = vld [vmem:[%s955] sm:$0xf]
      %s957 = ssub.f32 1.0, %s949
      %v958 = vstv %s957
      %v959 = vmul.f32 %v952, %v958
      %v960 = vstv %s949
      %v961 = vmul.f32 %v956, %v960
      %v962 = vadd.f32 %v959, %v961
      %v963 = vstv %s941
      %v964 = vmul.f32 %v962, %v963
      %v966 = vsel %vm302, %v964, 0
      %968 = vmatpush.msra.mxu0 0.0
      %969 = vmatpush.msra.mxu0 0.0
      %970 = vmatpush.msra.mxu0 0.0
      %971 = vmatpush.msra.mxu0 0.0
      %972 = vmatpush.msra.mxu0 0.0
      %973 = vmatpush.msra.mxu0 0.0
      %974 = vmatpush.msra.mxu0 0.0
      %975 = vmatpush.msra.mxu0 0.0
      %976 = vmatpush.msra.mxu0 %v266
      %977 = vmatpush.msra.mxu0 %v264
      %978 = vmatpush.msra.mxu0 %v262
      %979 = vmatpush.msra.mxu0 %v260
      %980 = vmatpush.msra.mxu0 %v258
      %981 = vmatpush.msra.mxu0 %v256
      %982 = vmatpush.msra.mxu0 %v254
      %983 = vmatpush.msra.mxu0 %v252
      %984 = vmatmul.f32.gmra.mxu0 %v966
      %v985 = vpop.f32.mrf.mxu0
      %v986 = vadd.f32 0.0, %v985
      %987 = vdwg.mxu0
      %988 = vmatpush.msra.mxu0 0.0
      %989 = vmatpush.msra.mxu0 0.0
      %990 = vmatpush.msra.mxu0 0.0
      %991 = vmatpush.msra.mxu0 0.0
      %992 = vmatpush.msra.mxu0 0.0
      %993 = vmatpush.msra.mxu0 0.0
      %994 = vmatpush.msra.mxu0 0.0
      %995 = vmatpush.msra.mxu0 0.0
      %996 = vmatpush.msra.mxu0 %v267
      %997 = vmatpush.msra.mxu0 %v265
      %998 = vmatpush.msra.mxu0 %v263
      %999 = vmatpush.msra.mxu0 %v261
      %1000 = vmatpush.msra.mxu0 %v259
      %1001 = vmatpush.msra.mxu0 %v257
      %1002 = vmatpush.msra.mxu0 %v255
      %1003 = vmatpush.msra.mxu0 %v253
      %1004 = vmatmul.f32.gmra.mxu0 %v966
      %v1005 = vpop.f32.mrf.mxu0
      %v1006 = vadd.f32 0.0, %v1005
      %1007 = vdwg.mxu0
      %v1010 = vrot.slane %v469, 4
      %v1011 = vrot.slane %v489, 4
      %v1014 = vsel %vm497, %v396, %v1010
      %v1015 = vsel %vm497, %v416, %v1011
      %v1016 = vpack.c.bf16 %v1015, %v1014
      %v1017 = vpack.c.bf16 %v1006, %v986
      %v1020 = vunpack.c.h.b16 %v1016
      %v1021 = vunpack.c.h.b16 %v1017
      %v1022 = vpack.c.b16 %v1021, %v1020
      %1023 = vrot.lane.b32.xlu0 %v1022, 17
      %v1024 = vpop.permute.xlu0 %1023
      %v1025 = vunpack.c.l.b16 %v1016
      %v1026 = vunpack.c.l.b16 %v1017
      %v1027 = vpack.c.b16 %v1026, %v1025
      %1028 = vrot.lane.b32.xlu0 %v1027, 17
      %v1029 = vpop.permute.xlu0 %1028
      %v1030 = vsel %vm514, %v1029, %v1024
      %v1034 = vsel %vm517, %v1024, %v1029
      %v1036 = vunpack.c.l.bf16 %v1034
      %v1037 = vunpack.c.l.bf16 %v1030
      %v1038 = vunpack.c.h.bf16 %v1034
      %v1039 = vunpack.c.h.bf16 %v1030
      %v1040 = vmul.f32 %v1036, %v539
      %v1041 = vmul.f32 %v1037, %v540
      %v1042 = vmul.f32 %v1038, %v539
      %v1043 = vmul.f32 %v1039, %v540
      %v1044 = vpack.c.bf16 %v1041, %v1040
      %v1045 = vpack.c.bf16 %v1043, %v1042
      %1046 = vrot.lane.b32.xlu0 %v1022, 16
      %v1047 = vpop.permute.xlu0 %1046
      %1048 = vrot.lane.b32.xlu0 %v1027, 16
      %v1049 = vpop.permute.xlu0 %1048
      %v1050 = vsel %vm551, %v1049, %v1047
      %v1054 = vsel %vm554, %v1047, %v1049
      %v1056 = vunpack.c.l.bf16 %v1054
      %v1057 = vunpack.c.l.bf16 %v1050
      %v1058 = vunpack.c.h.bf16 %v1054
      %v1059 = vunpack.c.h.bf16 %v1050
      %v1060 = vmul.f32 %v1056, %v571
      %v1061 = vmul.f32 %v1057, %v572
      %v1062 = vmul.f32 %v1058, %v571
      %v1063 = vmul.f32 %v1059, %v572
      %v1064 = vpack.c.bf16 %v1061, %v1060
      %v1065 = vpack.c.bf16 %v1063, %v1062
      %1066 = vrot.lane.b32.xlu0 %v1022, 15
      %v1067 = vpop.permute.xlu0 %1066
      %1068 = vrot.lane.b32.xlu0 %v1027, 15
      %v1069 = vpop.permute.xlu0 %1068
      %v1070 = vsel %vm583, %v1069, %v1067
      %v1074 = vsel %vm586, %v1067, %v1069
      %v1076 = vunpack.c.l.bf16 %v1074
      %v1077 = vunpack.c.l.bf16 %v1070
      %v1078 = vunpack.c.h.bf16 %v1074
      %v1079 = vunpack.c.h.bf16 %v1070
      %v1080 = vmul.f32 %v1076, %v597
      %v1081 = vmul.f32 %v1077, %v598
      %v1082 = vmul.f32 %v1078, %v597
      %v1083 = vmul.f32 %v1079, %v598
      %v1084 = vpack.c.bf16 %v1081, %v1080
      %v1085 = vpack.c.bf16 %v1083, %v1082
      %1086 = vrot.lane.b32.xlu0 %v1022, 1
      %v1087 = vpop.permute.xlu0 %1086
      %1088 = vrot.lane.b32.xlu0 %v1027, 1
      %v1089 = vpop.permute.xlu0 %1088
      %v1090 = vsel %vm609, %v1089, %v1087
      %v1094 = vsel %vm612, %v1087, %v1089
      %v1096 = vunpack.c.l.bf16 %v1094
      %v1097 = vunpack.c.l.bf16 %v1090
      %v1098 = vunpack.c.h.bf16 %v1094
      %v1099 = vunpack.c.h.bf16 %v1090
      %v1100 = vmul.f32 %v1096, %v623
      %v1101 = vmul.f32 %v1097, %v624
      %v1102 = vmul.f32 %v1098, %v623
      %v1103 = vmul.f32 %v1099, %v624
      %v1104 = vpack.c.bf16 %v1101, %v1100
      %v1105 = vpack.c.bf16 %v1103, %v1102
      %v1106 = vunpack.c.l.bf16 %v1016
      %v1107 = vunpack.c.h.bf16 %v1016
      %v1108 = vunpack.c.l.bf16 %v1017
      %v1109 = vunpack.c.h.bf16 %v1017
      %v1110 = vmul.f32 %v1106, %v637
      %v1111 = vmul.f32 %v1107, %v638
      %v1112 = vmul.f32 %v1108, %v637
      %v1113 = vmul.f32 %v1109, %v638
      %v1114 = vpack.c.bf16 %v1111, %v1110
      %v1115 = vpack.c.bf16 %v1113, %v1112
      %1116 = vrot.lane.b32.xlu0 %v1027, 127
      %v1117 = vpop.permute.xlu0 %1116
      %1118 = vrot.lane.b32.xlu0 %v1022, 127
      %v1119 = vpop.permute.xlu0 %1118
      %v1120 = vsel %vm649, %v1117, %v1119
      %v1124 = vsel %vm652, %v1119, %v1117
      %v1126 = vunpack.c.l.bf16 %v1120
      %v1127 = vunpack.c.l.bf16 %v1124
      %v1128 = vunpack.c.h.bf16 %v1120
      %v1129 = vunpack.c.h.bf16 %v1124
      %v1130 = vmul.f32 %v1126, %v663
      %v1131 = vmul.f32 %v1127, %v664
      %v1132 = vmul.f32 %v1128, %v663
      %v1133 = vmul.f32 %v1129, %v664
      %v1134 = vpack.c.bf16 %v1131, %v1130
      %v1135 = vpack.c.bf16 %v1133, %v1132
      %1136 = vrot.lane.b32.xlu0 %v1027, 113
      %v1137 = vpop.permute.xlu0 %1136
      %1138 = vrot.lane.b32.xlu0 %v1022, 113
      %v1139 = vpop.permute.xlu0 %1138
      %v1140 = vsel %vm675, %v1137, %v1139
      %v1144 = vsel %vm678, %v1139, %v1137
      %v1146 = vunpack.c.l.bf16 %v1140
      %v1147 = vunpack.c.l.bf16 %v1144
      %v1148 = vunpack.c.h.bf16 %v1140
      %v1149 = vunpack.c.h.bf16 %v1144
      %v1150 = vmul.f32 %v1146, %v689
      %v1151 = vmul.f32 %v1147, %v690
      %v1152 = vmul.f32 %v1148, %v689
      %v1153 = vmul.f32 %v1149, %v690
      %v1154 = vpack.c.bf16 %v1151, %v1150
      %v1155 = vpack.c.bf16 %v1153, %v1152
      %1156 = vrot.lane.b32.xlu0 %v1027, 112
      %v1157 = vpop.permute.xlu0 %1156
      %1158 = vrot.lane.b32.xlu0 %v1022, 112
      %v1159 = vpop.permute.xlu0 %1158
      %v1160 = vsel %vm701, %v1157, %v1159
      %v1164 = vsel %vm704, %v1159, %v1157
      %v1166 = vunpack.c.l.bf16 %v1160
      %v1167 = vunpack.c.l.bf16 %v1164
      %v1168 = vunpack.c.h.bf16 %v1160
      %v1169 = vunpack.c.h.bf16 %v1164
      %v1170 = vmul.f32 %v1166, %v715
      %v1171 = vmul.f32 %v1167, %v716
      %v1172 = vmul.f32 %v1168, %v715
      %v1173 = vmul.f32 %v1169, %v716
      %v1174 = vpack.c.bf16 %v1171, %v1170
      %v1175 = vpack.c.bf16 %v1173, %v1172
      %1176 = vrot.lane.b32.xlu0 %v1027, 111
      %v1177 = vpop.permute.xlu0 %1176
      %1178 = vrot.lane.b32.xlu0 %v1022, 111
      %v1179 = vpop.permute.xlu0 %1178
      %v1180 = vsel %vm727, %v1177, %v1179
      %v1184 = vsel %vm730, %v1179, %v1177
      %v1186 = vunpack.c.l.bf16 %v1180
      %v1187 = vunpack.c.l.bf16 %v1184
      %v1188 = vunpack.c.h.bf16 %v1180
      %v1189 = vunpack.c.h.bf16 %v1184
      %v1190 = vmul.f32 %v1186, %v752
      %v1191 = vmul.f32 %v1187, %v753
      %v1192 = vmul.f32 %v1188, %v752
      %v1193 = vmul.f32 %v1189, %v753
      %v1194 = vpack.c.bf16 %v1191, %v1190
      %v1195 = vpack.c.bf16 %v1193, %v1192
      %v1198 = vunpack.c.l.b16 %v1044
      %v1199 = vunpack.c.h.b16 %v1044
      %v1200 = vunpack.c.l.b16 %v1045
      %v1201 = vunpack.c.h.b16 %v1045
      %v1202 = vpack.c.b16 %v1200, %v1198
      %v1203 = vpack.c.b16 %v1201, %v1199
      %v1206 = vunpack.c.l.b16 %v1064
      %v1207 = vunpack.c.h.b16 %v1064
      %v1208 = vunpack.c.l.b16 %v1065
      %v1209 = vunpack.c.h.b16 %v1065
      %v1210 = vpack.c.b16 %v1208, %v1206
      %v1211 = vpack.c.b16 %v1209, %v1207
      %v1212 = vrot.slane %v1210, 2
      %v1213 = vrot.slane %v1211, 2
      %v1216 = vunpack.c.l.b16 %v1084
      %v1217 = vunpack.c.h.b16 %v1084
      %v1218 = vunpack.c.l.b16 %v1085
      %v1219 = vunpack.c.h.b16 %v1085
      %v1220 = vpack.c.b16 %v1216, %v1216
      %v1221 = vpack.c.b16 %v1217, %v1217
      %v1222 = vpack.c.b16 %v1218, %v1218
      %v1223 = vpack.c.b16 %v1219, %v1219
      %v1226 = vunpack.c.l.b16 %v1104
      %v1227 = vunpack.c.h.b16 %v1104
      %v1228 = vunpack.c.l.b16 %v1105
      %v1229 = vunpack.c.h.b16 %v1105
      %v1230 = vpack.c.b16 %v1228, %v1226
      %v1231 = vpack.c.b16 %v1229, %v1227
      %v1232 = vrot.slane %v1230, 6
      %v1233 = vrot.slane %v1231, 6
      %v1236 = vunpack.c.l.b16 %v1114
      %v1237 = vunpack.c.h.b16 %v1114
      %v1238 = vunpack.c.l.b16 %v1115
      %v1239 = vunpack.c.h.b16 %v1115
      %v1240 = vpack.c.b16 %v1238, %v1236
      %v1241 = vpack.c.b16 %v1239, %v1237
      %v1244 = vunpack.c.l.b16 %v1134
      %v1245 = vunpack.c.h.b16 %v1134
      %v1246 = vunpack.c.l.b16 %v1135
      %v1247 = vunpack.c.h.b16 %v1135
      %v1248 = vpack.c.b16 %v1246, %v1244
      %v1249 = vpack.c.b16 %v1247, %v1245
      %v1250 = vrot.slane %v1248, 2
      %v1251 = vrot.slane %v1249, 2
      %v1254 = vunpack.c.l.b16 %v1154
      %v1255 = vunpack.c.h.b16 %v1154
      %v1256 = vunpack.c.l.b16 %v1155
      %v1257 = vunpack.c.h.b16 %v1155
      %v1258 = vpack.c.b16 %v1254, %v1254
      %v1259 = vpack.c.b16 %v1255, %v1255
      %v1260 = vpack.c.b16 %v1256, %v1256
      %v1261 = vpack.c.b16 %v1257, %v1257
      %v1264 = vunpack.c.l.b16 %v1174
      %v1265 = vunpack.c.h.b16 %v1174
      %v1266 = vunpack.c.l.b16 %v1175
      %v1267 = vunpack.c.h.b16 %v1175
      %v1268 = vpack.c.b16 %v1266, %v1264
      %v1269 = vpack.c.b16 %v1267, %v1265
      %v1270 = vrot.slane %v1268, 6
      %v1271 = vrot.slane %v1269, 6
      %v1274 = vunpack.c.l.b16 %v1194
      %v1275 = vunpack.c.h.b16 %v1194
      %v1276 = vunpack.c.l.b16 %v1195
      %v1277 = vunpack.c.h.b16 %v1195
      %v1278 = vpack.c.b16 %v1276, %v1274
      %v1279 = vpack.c.b16 %v1277, %v1275
      %v1282 = vsel %vm844, %v1202, %v1212
      %v1286 = vsel %vm844, %v1203, %v1213
      %v1289 = vsel %vm497, %v1212, %v1220
      %v1292 = vsel %vm497, %v1213, %v1221
      %v1296 = vsel %vm859, %v1222, %v1232
      %v1300 = vsel %vm859, %v1223, %v1233
      %v1304 = vsel %vm844, %v1240, %v1250
      %v1308 = vsel %vm844, %v1241, %v1251
      %v1311 = vsel %vm497, %v1250, %v1258
      %v1314 = vsel %vm497, %v1251, %v1259
      %v1318 = vsel %vm859, %v1260, %v1270
      %v1322 = vsel %vm859, %v1261, %v1271
      %v1325 = vsel %vm844, %v1278, 0
      %v1328 = vsel %vm844, %v1279, 0
      %1330 = vmatpush.bf16.msra.mxu0 0
      %1331 = vmatpush.bf16.msra.mxu0 %v1325
      %1332 = vmatpush.bf16.msra.mxu0 %v1318
      %1333 = vmatpush.bf16.msra.mxu0 %v1311
      %1334 = vmatpush.bf16.msra.mxu0 %v1304
      %1335 = vmatpush.bf16.msra.mxu0 %v1296
      %1336 = vmatpush.bf16.msra.mxu0 %v1289
      %1337 = vmatpush.bf16.msra.mxu0 %v1282
      %1338 = vmatmul.bf16.gmra.mxu0 %v897
      %v1339 = vpop.f32.mrf.mxu0
      %v1340 = vadd.f32 %v893, %v1339
      %v1341 = vpop.f32.mrf.mxu0
      %1342 = vdwg.mxu0
      %1343 = vmatpush.bf16.msra.mxu0 0
      %1344 = vmatpush.bf16.msra.mxu0 %v1328
      %1345 = vmatpush.bf16.msra.mxu0 %v1322
      %1346 = vmatpush.bf16.msra.mxu0 %v1314
      %1347 = vmatpush.bf16.msra.mxu0 %v1308
      %1348 = vmatpush.bf16.msra.mxu0 %v1300
      %1349 = vmatpush.bf16.msra.mxu0 %v1292
      %1350 = vmatpush.bf16.msra.mxu0 %v1286
      %1351 = vmatmul.bf16.gmra.mxu0 %v897
      %v1352 = vpop.f32.mrf.mxu0
      %v1353 = vadd.f32 %v893, %v1352
      %v1354 = vpop.f32.mrf.mxu0
      %1355 = vdwg.mxu0
      %v1356 = vmax.f32 %v1340, 0.0
      %v1357 = vmax.f32 %v1353, 0.0
      %s1358 = scalar_lea.vmem %s248, 16
      %1359 = vst [vmem:[%s1358] sm:$0xff] %v1356
      %1360 = vst [vmem:[%s1358 + $0x8] sm:$0xff] %v1357
      %s1361 = sadd.s32 %s251, 3
      %p1362 = scmp.ge.s32.totalorder %s1361, 0
      %p1363 = scmp.lt.s32.totalorder %s1361, 16
      %p1364 = pnand %p1362, %p1363
      %p1365 = pneg %p1364
      %s1366 = scalar_select %p1365, 1, 0
      %s1367 = scvt.s32.f32 %s1366
      %s1368 = scvt.s32.f32 %s1361
      %s1369 = smul.f32 %s1368, 0.46666667
      %s1370 = sfloor.f32 %s1369
      %s1371 = smax.f32 %s1370, 0.0
      %s1372 = smin.f32 %s1371, 6.0
      %s1373 = scvt.f32.s32.to.zero.pseudo %s1372
      %s1374 = scvt.s32.f32 %s1373
      %s1375 = ssub.f32 %s1369, %s1374
      %s1376 = smul.u32 %s1373, 4
      %s1377 = scalar_lea.vmem %s238, %s1376
      %v1378 = vld [vmem:[%s1377] sm:$0xf]
      %s1379 = sadd.s32 %s1373, 1
      %s1380 = smul.u32 %s1379, 4
      %s1381 = scalar_lea.vmem %s238, %s1380
      %v1382 = vld [vmem:[%s1381] sm:$0xf]
      %s1383 = ssub.f32 1.0, %s1375
      %v1384 = vstv %s1383
      %v1385 = vmul.f32 %v1378, %v1384
      %v1386 = vstv %s1375
      %v1387 = vmul.f32 %v1382, %v1386
      %v1388 = vadd.f32 %v1385, %v1387
      %v1389 = vstv %s1367
      %v1390 = vmul.f32 %v1388, %v1389
      %v1392 = vsel %vm302, %v1390, 0
      %1394 = vmatpush.msra.mxu0 0.0
      %1395 = vmatpush.msra.mxu0 0.0
      %1396 = vmatpush.msra.mxu0 0.0
      %1397 = vmatpush.msra.mxu0 0.0
      %1398 = vmatpush.msra.mxu0 0.0
      %1399 = vmatpush.msra.mxu0 0.0
      %1400 = vmatpush.msra.mxu0 0.0
      %1401 = vmatpush.msra.mxu0 0.0
      %1402 = vmatpush.msra.mxu0 %v266
      %1403 = vmatpush.msra.mxu0 %v264
      %1404 = vmatpush.msra.mxu0 %v262
      %1405 = vmatpush.msra.mxu0 %v260
      %1406 = vmatpush.msra.mxu0 %v258
      %1407 = vmatpush.msra.mxu0 %v256
      %1408 = vmatpush.msra.mxu0 %v254
      %1409 = vmatpush.msra.mxu0 %v252
      %1410 = vmatmul.f32.gmra.mxu0 %v1392
      %v1411 = vpop.f32.mrf.mxu0
      %v1412 = vadd.f32 0.0, %v1411
      %1413 = vdwg.mxu0
      %1414 = vmatpush.msra.mxu0 0.0
      %1415 = vmatpush.msra.mxu0 0.0
      %1416 = vmatpush.msra.mxu0 0.0
      %1417 = vmatpush.msra.mxu0 0.0
      %1418 = vmatpush.msra.mxu0 0.0
      %1419 = vmatpush.msra.mxu0 0.0
      %1420 = vmatpush.msra.mxu0 0.0
      %1421 = vmatpush.msra.mxu0 0.0
      %1422 = vmatpush.msra.mxu0 %v267
      %1423 = vmatpush.msra.mxu0 %v265
      %1424 = vmatpush.msra.mxu0 %v263
      %1425 = vmatpush.msra.mxu0 %v261
      %1426 = vmatpush.msra.mxu0 %v259
      %1427 = vmatpush.msra.mxu0 %v257
      %1428 = vmatpush.msra.mxu0 %v255
      %1429 = vmatpush.msra.mxu0 %v253
      %1430 = vmatmul.f32.gmra.mxu0 %v1392
      %v1431 = vpop.f32.mrf.mxu0
      %v1432 = vadd.f32 0.0, %v1431
      %1433 = vdwg.mxu0
      %v1436 = vrot.slane %v986, 4
      %v1437 = vrot.slane %v1006, 4
      %v1440 = vsel %vm497, %v469, %v1436
      %v1441 = vsel %vm497, %v489, %v1437
      %v1442 = vpack.c.bf16 %v1441, %v1440
      %v1443 = vpack.c.bf16 %v1432, %v1412
      %v1446 = vunpack.c.h.b16 %v1442
      %v1447 = vunpack.c.h.b16 %v1443
      %v1448 = vpack.c.b16 %v1447, %v1446
      %1449 = vrot.lane.b32.xlu0 %v1448, 17
      %v1450 = vpop.permute.xlu0 %1449
      %v1451 = vunpack.c.l.b16 %v1442
      %v1452 = vunpack.c.l.b16 %v1443
      %v1453 = vpack.c.b16 %v1452, %v1451
      %1454 = vrot.lane.b32.xlu0 %v1453, 17
      %v1455 = vpop.permute.xlu0 %1454
      %v1456 = vsel %vm514, %v1455, %v1450
      %v1460 = vsel %vm517, %v1450, %v1455
      %v1462 = vunpack.c.l.bf16 %v1460
      %v1463 = vunpack.c.l.bf16 %v1456
      %v1464 = vunpack.c.h.bf16 %v1460
      %v1465 = vunpack.c.h.bf16 %v1456
      %v1466 = vmul.f32 %v1462, %v539
      %v1467 = vmul.f32 %v1463, %v540
      %v1468 = vmul.f32 %v1464, %v539
      %v1469 = vmul.f32 %v1465, %v540
      %v1470 = vpack.c.bf16 %v1467, %v1466
      %v1471 = vpack.c.bf16 %v1469, %v1468
      %1472 = vrot.lane.b32.xlu0 %v1448, 16
      %v1473 = vpop.permute.xlu0 %1472
      %1474 = vrot.lane.b32.xlu0 %v1453, 16
      %v1475 = vpop.permute.xlu0 %1474
      %v1476 = vsel %vm551, %v1475, %v1473
      %v1480 = vsel %vm554, %v1473, %v1475
      %v1482 = vunpack.c.l.bf16 %v1480
      %v1483 = vunpack.c.l.bf16 %v1476
      %v1484 = vunpack.c.h.bf16 %v1480
      %v1485 = vunpack.c.h.bf16 %v1476
      %v1486 = vmul.f32 %v1482, %v571
      %v1487 = vmul.f32 %v1483, %v572
      %v1488 = vmul.f32 %v1484, %v571
      %v1489 = vmul.f32 %v1485, %v572
      %v1490 = vpack.c.bf16 %v1487, %v1486
      %v1491 = vpack.c.bf16 %v1489, %v1488
      %1492 = vrot.lane.b32.xlu0 %v1448, 15
      %v1493 = vpop.permute.xlu0 %1492
      %1494 = vrot.lane.b32.xlu0 %v1453, 15
      %v1495 = vpop.permute.xlu0 %1494
      %v1496 = vsel %vm583, %v1495, %v1493
      %v1500 = vsel %vm586, %v1493, %v1495
      %v1502 = vunpack.c.l.bf16 %v1500
      %v1503 = vunpack.c.l.bf16 %v1496
      %v1504 = vunpack.c.h.bf16 %v1500
      %v1505 = vunpack.c.h.bf16 %v1496
      %v1506 = vmul.f32 %v1502, %v597
      %v1507 = vmul.f32 %v1503, %v598
      %v1508 = vmul.f32 %v1504, %v597
      %v1509 = vmul.f32 %v1505, %v598
      %v1510 = vpack.c.bf16 %v1507, %v1506
      %v1511 = vpack.c.bf16 %v1509, %v1508
      %1512 = vrot.lane.b32.xlu0 %v1448, 1
      %v1513 = vpop.permute.xlu0 %1512
      %1514 = vrot.lane.b32.xlu0 %v1453, 1
      %v1515 = vpop.permute.xlu0 %1514
      %v1516 = vsel %vm609, %v1515, %v1513
      %v1520 = vsel %vm612, %v1513, %v1515
      %v1522 = vunpack.c.l.bf16 %v1520
      %v1523 = vunpack.c.l.bf16 %v1516
      %v1524 = vunpack.c.h.bf16 %v1520
      %v1525 = vunpack.c.h.bf16 %v1516
      %v1526 = vmul.f32 %v1522, %v623
      %v1527 = vmul.f32 %v1523, %v624
      %v1528 = vmul.f32 %v1524, %v623
      %v1529 = vmul.f32 %v1525, %v624
      %v1530 = vpack.c.bf16 %v1527, %v1526
      %v1531 = vpack.c.bf16 %v1529, %v1528
      %v1532 = vunpack.c.l.bf16 %v1442
      %v1533 = vunpack.c.h.bf16 %v1442
      %v1534 = vunpack.c.l.bf16 %v1443
      %v1535 = vunpack.c.h.bf16 %v1443
      %v1536 = vmul.f32 %v1532, %v637
      %v1537 = vmul.f32 %v1533, %v638
      %v1538 = vmul.f32 %v1534, %v637
      %v1539 = vmul.f32 %v1535, %v638
      %v1540 = vpack.c.bf16 %v1537, %v1536
      %v1541 = vpack.c.bf16 %v1539, %v1538
      %1542 = vrot.lane.b32.xlu0 %v1453, 127
      %v1543 = vpop.permute.xlu0 %1542
      %1544 = vrot.lane.b32.xlu0 %v1448, 127
      %v1545 = vpop.permute.xlu0 %1544
      %v1546 = vsel %vm649, %v1543, %v1545
      %v1550 = vsel %vm652, %v1545, %v1543
      %v1552 = vunpack.c.l.bf16 %v1546
      %v1553 = vunpack.c.l.bf16 %v1550
      %v1554 = vunpack.c.h.bf16 %v1546
      %v1555 = vunpack.c.h.bf16 %v1550
      %v1556 = vmul.f32 %v1552, %v663
      %v1557 = vmul.f32 %v1553, %v664
      %v1558 = vmul.f32 %v1554, %v663
      %v1559 = vmul.f32 %v1555, %v664
      %v1560 = vpack.c.bf16 %v1557, %v1556
      %v1561 = vpack.c.bf16 %v1559, %v1558
      %1562 = vrot.lane.b32.xlu0 %v1453, 113
      %v1563 = vpop.permute.xlu0 %1562
      %1564 = vrot.lane.b32.xlu0 %v1448, 113
      %v1565 = vpop.permute.xlu0 %1564
      %v1566 = vsel %vm675, %v1563, %v1565
      %v1570 = vsel %vm678, %v1565, %v1563
      %v1572 = vunpack.c.l.bf16 %v1566
      %v1573 = vunpack.c.l.bf16 %v1570
      %v1574 = vunpack.c.h.bf16 %v1566
      %v1575 = vunpack.c.h.bf16 %v1570
      %v1576 = vmul.f32 %v1572, %v689
      %v1577 = vmul.f32 %v1573, %v690
      %v1578 = vmul.f32 %v1574, %v689
      %v1579 = vmul.f32 %v1575, %v690
      %v1580 = vpack.c.bf16 %v1577, %v1576
      %v1581 = vpack.c.bf16 %v1579, %v1578
      %1582 = vrot.lane.b32.xlu0 %v1453, 112
      %v1583 = vpop.permute.xlu0 %1582
      %1584 = vrot.lane.b32.xlu0 %v1448, 112
      %v1585 = vpop.permute.xlu0 %1584
      %v1586 = vsel %vm701, %v1583, %v1585
      %v1590 = vsel %vm704, %v1585, %v1583
      %v1592 = vunpack.c.l.bf16 %v1586
      %v1593 = vunpack.c.l.bf16 %v1590
      %v1594 = vunpack.c.h.bf16 %v1586
      %v1595 = vunpack.c.h.bf16 %v1590
      %v1596 = vmul.f32 %v1592, %v715
      %v1597 = vmul.f32 %v1593, %v716
      %v1598 = vmul.f32 %v1594, %v715
      %v1599 = vmul.f32 %v1595, %v716
      %v1600 = vpack.c.bf16 %v1597, %v1596
      %v1601 = vpack.c.bf16 %v1599, %v1598
      %1602 = vrot.lane.b32.xlu0 %v1453, 111
      %v1603 = vpop.permute.xlu0 %1602
      %1604 = vrot.lane.b32.xlu0 %v1448, 111
      %v1605 = vpop.permute.xlu0 %1604
      %v1606 = vsel %vm727, %v1603, %v1605
      %v1610 = vsel %vm730, %v1605, %v1603
      %v1612 = vunpack.c.l.bf16 %v1606
      %v1613 = vunpack.c.l.bf16 %v1610
      %v1614 = vunpack.c.h.bf16 %v1606
      %v1615 = vunpack.c.h.bf16 %v1610
      %v1616 = vmul.f32 %v1612, %v752
      %v1617 = vmul.f32 %v1613, %v753
      %v1618 = vmul.f32 %v1614, %v752
      %v1619 = vmul.f32 %v1615, %v753
      %v1620 = vpack.c.bf16 %v1617, %v1616
      %v1621 = vpack.c.bf16 %v1619, %v1618
      %v1624 = vunpack.c.l.b16 %v1470
      %v1625 = vunpack.c.h.b16 %v1470
      %v1626 = vunpack.c.l.b16 %v1471
      %v1627 = vunpack.c.h.b16 %v1471
      %v1628 = vpack.c.b16 %v1626, %v1624
      %v1629 = vpack.c.b16 %v1627, %v1625
      %v1632 = vunpack.c.l.b16 %v1490
      %v1633 = vunpack.c.h.b16 %v1490
      %v1634 = vunpack.c.l.b16 %v1491
      %v1635 = vunpack.c.h.b16 %v1491
      %v1636 = vpack.c.b16 %v1634, %v1632
      %v1637 = vpack.c.b16 %v1635, %v1633
      %v1638 = vrot.slane %v1636, 2
      %v1639 = vrot.slane %v1637, 2
      %v1642 = vunpack.c.l.b16 %v1510
      %v1643 = vunpack.c.h.b16 %v1510
      %v1644 = vunpack.c.l.b16 %v1511
      %v1645 = vunpack.c.h.b16 %v1511
      %v1646 = vpack.c.b16 %v1642, %v1642
      %v1647 = vpack.c.b16 %v1643, %v1643
      %v1648 = vpack.c.b16 %v1644, %v1644
      %v1649 = vpack.c.b16 %v1645, %v1645
      %v1652 = vunpack.c.l.b16 %v1530
      %v1653 = vunpack.c.h.b16 %v1530
      %v1654 = vunpack.c.l.b16 %v1531
      %v1655 = vunpack.c.h.b16 %v1531
      %v1656 = vpack.c.b16 %v1654, %v1652
      %v1657 = vpack.c.b16 %v1655, %v1653
      %v1658 = vrot.slane %v1656, 6
      %v1659 = vrot.slane %v1657, 6
      %v1662 = vunpack.c.l.b16 %v1540
      %v1663 = vunpack.c.h.b16 %v1540
      %v1664 = vunpack.c.l.b16 %v1541
      %v1665 = vunpack.c.h.b16 %v1541
      %v1666 = vpack.c.b16 %v1664, %v1662
      %v1667 = vpack.c.b16 %v1665, %v1663
      %v1670 = vunpack.c.l.b16 %v1560
      %v1671 = vunpack.c.h.b16 %v1560
      %v1672 = vunpack.c.l.b16 %v1561
      %v1673 = vunpack.c.h.b16 %v1561
      %v1674 = vpack.c.b16 %v1672, %v1670
      %v1675 = vpack.c.b16 %v1673, %v1671
      %v1676 = vrot.slane %v1674, 2
      %v1677 = vrot.slane %v1675, 2
      %v1680 = vunpack.c.l.b16 %v1580
      %v1681 = vunpack.c.h.b16 %v1580
      %v1682 = vunpack.c.l.b16 %v1581
      %v1683 = vunpack.c.h.b16 %v1581
      %v1684 = vpack.c.b16 %v1680, %v1680
      %v1685 = vpack.c.b16 %v1681, %v1681
      %v1686 = vpack.c.b16 %v1682, %v1682
      %v1687 = vpack.c.b16 %v1683, %v1683
      %v1690 = vunpack.c.l.b16 %v1600
      %v1691 = vunpack.c.h.b16 %v1600
      %v1692 = vunpack.c.l.b16 %v1601
      %v1693 = vunpack.c.h.b16 %v1601
      %v1694 = vpack.c.b16 %v1692, %v1690
      %v1695 = vpack.c.b16 %v1693, %v1691
      %v1696 = vrot.slane %v1694, 6
      %v1697 = vrot.slane %v1695, 6
      %v1700 = vunpack.c.l.b16 %v1620
      %v1701 = vunpack.c.h.b16 %v1620
      %v1702 = vunpack.c.l.b16 %v1621
      %v1703 = vunpack.c.h.b16 %v1621
      %v1704 = vpack.c.b16 %v1702, %v1700
      %v1705 = vpack.c.b16 %v1703, %v1701
      %v1708 = vsel %vm844, %v1628, %v1638
      %v1712 = vsel %vm844, %v1629, %v1639
      %v1715 = vsel %vm497, %v1638, %v1646
      %v1718 = vsel %vm497, %v1639, %v1647
      %v1722 = vsel %vm859, %v1648, %v1658
      %v1726 = vsel %vm859, %v1649, %v1659
      %v1730 = vsel %vm844, %v1666, %v1676
      %v1734 = vsel %vm844, %v1667, %v1677
      %v1737 = vsel %vm497, %v1676, %v1684
      %v1740 = vsel %vm497, %v1677, %v1685
      %v1744 = vsel %vm859, %v1686, %v1696
      %v1748 = vsel %vm859, %v1687, %v1697
      %v1751 = vsel %vm844, %v1704, 0
      %v1754 = vsel %vm844, %v1705, 0
      %1756 = vmatpush.bf16.msra.mxu0 0
      %1757 = vmatpush.bf16.msra.mxu0 %v1751
      %1758 = vmatpush.bf16.msra.mxu0 %v1744
      %1759 = vmatpush.bf16.msra.mxu0 %v1737
      %1760 = vmatpush.bf16.msra.mxu0 %v1730
      %1761 = vmatpush.bf16.msra.mxu0 %v1722
      %1762 = vmatpush.bf16.msra.mxu0 %v1715
      %1763 = vmatpush.bf16.msra.mxu0 %v1708
      %1764 = vmatmul.bf16.gmra.mxu0 %v897
      %v1765 = vpop.f32.mrf.mxu0
      %v1766 = vadd.f32 %v893, %v1765
      %v1767 = vpop.f32.mrf.mxu0
      %1768 = vdwg.mxu0
      %1769 = vmatpush.bf16.msra.mxu0 0
      %1770 = vmatpush.bf16.msra.mxu0 %v1754
      %1771 = vmatpush.bf16.msra.mxu0 %v1748
      %1772 = vmatpush.bf16.msra.mxu0 %v1740
      %1773 = vmatpush.bf16.msra.mxu0 %v1734
      %1774 = vmatpush.bf16.msra.mxu0 %v1726
      %1775 = vmatpush.bf16.msra.mxu0 %v1718
      %1776 = vmatpush.bf16.msra.mxu0 %v1712
      %1777 = vmatmul.bf16.gmra.mxu0 %v897
      %v1778 = vpop.f32.mrf.mxu0
      %v1779 = vadd.f32 %v893, %v1778
      %v1780 = vpop.f32.mrf.mxu0
      %1781 = vdwg.mxu0
      %v1782 = vmax.f32 %v1766, 0.0
      %v1783 = vmax.f32 %v1779, 0.0
      %s1784 = scalar_lea.vmem %s248, 32
      %1785 = vst [vmem:[%s1784] sm:$0xff] %v1782
      %1786 = vst [vmem:[%s1784 + $0x8] sm:$0xff] %v1783
      %s1787 = sadd.s32 %s251, 4
      %p1788 = scmp.ge.s32.totalorder %s1787, 0
      %p1789 = scmp.lt.s32.totalorder %s1787, 16
      %p1790 = pnand %p1788, %p1789
      %p1791 = pneg %p1790
      %s1792 = scalar_select %p1791, 1, 0
      %s1793 = scvt.s32.f32 %s1792
      %s1794 = scvt.s32.f32 %s1787
      %s1795 = smul.f32 %s1794, 0.46666667
      %s1796 = sfloor.f32 %s1795
      %s1797 = smax.f32 %s1796, 0.0
      %s1798 = smin.f32 %s1797, 6.0
      %s1799 = scvt.f32.s32.to.zero.pseudo %s1798
      %s1800 = scvt.s32.f32 %s1799
      %s1801 = ssub.f32 %s1795, %s1800
      %s1802 = smul.u32 %s1799, 4
      %s1803 = scalar_lea.vmem %s238, %s1802
      %v1804 = vld [vmem:[%s1803] sm:$0xf]
      %s1805 = sadd.s32 %s1799, 1
      %s1806 = smul.u32 %s1805, 4
      %s1807 = scalar_lea.vmem %s238, %s1806
      %v1808 = vld [vmem:[%s1807] sm:$0xf]
      %s1809 = ssub.f32 1.0, %s1801
      %v1810 = vstv %s1809
      %v1811 = vmul.f32 %v1804, %v1810
      %v1812 = vstv %s1801
      %v1813 = vmul.f32 %v1808, %v1812
      %v1814 = vadd.f32 %v1811, %v1813
      %v1815 = vstv %s1793
      %v1816 = vmul.f32 %v1814, %v1815
      %v1818 = vsel %vm302, %v1816, 0
      %1820 = vmatpush.msra.mxu0 0.0
      %1821 = vmatpush.msra.mxu0 0.0
      %1822 = vmatpush.msra.mxu0 0.0
      %1823 = vmatpush.msra.mxu0 0.0
      %1824 = vmatpush.msra.mxu0 0.0
      %1825 = vmatpush.msra.mxu0 0.0
      %1826 = vmatpush.msra.mxu0 0.0
      %1827 = vmatpush.msra.mxu0 0.0
      %1828 = vmatpush.msra.mxu0 %v266
      %1829 = vmatpush.msra.mxu0 %v264
      %1830 = vmatpush.msra.mxu0 %v262
      %1831 = vmatpush.msra.mxu0 %v260
      %1832 = vmatpush.msra.mxu0 %v258
      %1833 = vmatpush.msra.mxu0 %v256
      %1834 = vmatpush.msra.mxu0 %v254
      %1835 = vmatpush.msra.mxu0 %v252
      %1836 = vmatmul.f32.gmra.mxu0 %v1818
      %v1837 = vpop.f32.mrf.mxu0
      %v1838 = vadd.f32 0.0, %v1837
      %1839 = vdwg.mxu0
      %1840 = vmatpush.msra.mxu0 0.0
      %1841 = vmatpush.msra.mxu0 0.0
      %1842 = vmatpush.msra.mxu0 0.0
      %1843 = vmatpush.msra.mxu0 0.0
      %1844 = vmatpush.msra.mxu0 0.0
      %1845 = vmatpush.msra.mxu0 0.0
      %1846 = vmatpush.msra.mxu0 0.0
      %1847 = vmatpush.msra.mxu0 0.0
      %1848 = vmatpush.msra.mxu0 %v267
      %1849 = vmatpush.msra.mxu0 %v265
      %1850 = vmatpush.msra.mxu0 %v263
      %1851 = vmatpush.msra.mxu0 %v261
      %1852 = vmatpush.msra.mxu0 %v259
      %1853 = vmatpush.msra.mxu0 %v257
      %1854 = vmatpush.msra.mxu0 %v255
      %1855 = vmatpush.msra.mxu0 %v253
      %1856 = vmatmul.f32.gmra.mxu0 %v1818
      %v1857 = vpop.f32.mrf.mxu0
      %v1858 = vadd.f32 0.0, %v1857
      %1859 = vdwg.mxu0
      %v1862 = vrot.slane %v1412, 4
      %v1863 = vrot.slane %v1432, 4
      %v1866 = vsel %vm497, %v986, %v1862
      %v1867 = vsel %vm497, %v1006, %v1863
      %v1868 = vpack.c.bf16 %v1867, %v1866
      %v1869 = vpack.c.bf16 %v1858, %v1838
      %v1872 = vunpack.c.h.b16 %v1868
      %v1873 = vunpack.c.h.b16 %v1869
      %v1874 = vpack.c.b16 %v1873, %v1872
      %1875 = vrot.lane.b32.xlu0 %v1874, 17
      %v1876 = vpop.permute.xlu0 %1875
      %v1877 = vunpack.c.l.b16 %v1868
      %v1878 = vunpack.c.l.b16 %v1869
      %v1879 = vpack.c.b16 %v1878, %v1877
      %1880 = vrot.lane.b32.xlu0 %v1879, 17
      %v1881 = vpop.permute.xlu0 %1880
      %v1882 = vsel %vm514, %v1881, %v1876
      %v1886 = vsel %vm517, %v1876, %v1881
      %v1888 = vunpack.c.l.bf16 %v1886
      %v1889 = vunpack.c.l.bf16 %v1882
      %v1890 = vunpack.c.h.bf16 %v1886
      %v1891 = vunpack.c.h.bf16 %v1882
      %v1892 = vmul.f32 %v1888, %v539
      %v1893 = vmul.f32 %v1889, %v540
      %v1894 = vmul.f32 %v1890, %v539
      %v1895 = vmul.f32 %v1891, %v540
      %v1896 = vpack.c.bf16 %v1893, %v1892
      %v1897 = vpack.c.bf16 %v1895, %v1894
      %1898 = vrot.lane.b32.xlu0 %v1874, 16
      %v1899 = vpop.permute.xlu0 %1898
      %1900 = vrot.lane.b32.xlu0 %v1879, 16
      %v1901 = vpop.permute.xlu0 %1900
      %v1902 = vsel %vm551, %v1901, %v1899
      %v1906 = vsel %vm554, %v1899, %v1901
      %v1908 = vunpack.c.l.bf16 %v1906
      %v1909 = vunpack.c.l.bf16 %v1902
      %v1910 = vunpack.c.h.bf16 %v1906
      %v1911 = vunpack.c.h.bf16 %v1902
      %v1912 = vmul.f32 %v1908, %v571
      %v1913 = vmul.f32 %v1909, %v572
      %v1914 = vmul.f32 %v1910, %v571
      %v1915 = vmul.f32 %v1911, %v572
      %v1916 = vpack.c.bf16 %v1913, %v1912
      %v1917 = vpack.c.bf16 %v1915, %v1914
      %1918 = vrot.lane.b32.xlu0 %v1874, 15
      %v1919 = vpop.permute.xlu0 %1918
      %1920 = vrot.lane.b32.xlu0 %v1879, 15
      %v1921 = vpop.permute.xlu0 %1920
      %v1922 = vsel %vm583, %v1921, %v1919
      %v1926 = vsel %vm586, %v1919, %v1921
      %v1928 = vunpack.c.l.bf16 %v1926
      %v1929 = vunpack.c.l.bf16 %v1922
      %v1930 = vunpack.c.h.bf16 %v1926
      %v1931 = vunpack.c.h.bf16 %v1922
      %v1932 = vmul.f32 %v1928, %v597
      %v1933 = vmul.f32 %v1929, %v598
      %v1934 = vmul.f32 %v1930, %v597
      %v1935 = vmul.f32 %v1931, %v598
      %v1936 = vpack.c.bf16 %v1933, %v1932
      %v1937 = vpack.c.bf16 %v1935, %v1934
      %1938 = vrot.lane.b32.xlu0 %v1874, 1
      %v1939 = vpop.permute.xlu0 %1938
      %1940 = vrot.lane.b32.xlu0 %v1879, 1
      %v1941 = vpop.permute.xlu0 %1940
      %v1942 = vsel %vm609, %v1941, %v1939
      %v1946 = vsel %vm612, %v1939, %v1941
      %v1948 = vunpack.c.l.bf16 %v1946
      %v1949 = vunpack.c.l.bf16 %v1942
      %v1950 = vunpack.c.h.bf16 %v1946
      %v1951 = vunpack.c.h.bf16 %v1942
      %v1952 = vmul.f32 %v1948, %v623
      %v1953 = vmul.f32 %v1949, %v624
      %v1954 = vmul.f32 %v1950, %v623
      %v1955 = vmul.f32 %v1951, %v624
      %v1956 = vpack.c.bf16 %v1953, %v1952
      %v1957 = vpack.c.bf16 %v1955, %v1954
      %v1958 = vunpack.c.l.bf16 %v1868
      %v1959 = vunpack.c.h.bf16 %v1868
      %v1960 = vunpack.c.l.bf16 %v1869
      %v1961 = vunpack.c.h.bf16 %v1869
      %v1962 = vmul.f32 %v1958, %v637
      %v1963 = vmul.f32 %v1959, %v638
      %v1964 = vmul.f32 %v1960, %v637
      %v1965 = vmul.f32 %v1961, %v638
      %v1966 = vpack.c.bf16 %v1963, %v1962
      %v1967 = vpack.c.bf16 %v1965, %v1964
      %1968 = vrot.lane.b32.xlu0 %v1879, 127
      %v1969 = vpop.permute.xlu0 %1968
      %1970 = vrot.lane.b32.xlu0 %v1874, 127
      %v1971 = vpop.permute.xlu0 %1970
      %v1972 = vsel %vm649, %v1969, %v1971
      %v1976 = vsel %vm652, %v1971, %v1969
      %v1978 = vunpack.c.l.bf16 %v1972
      %v1979 = vunpack.c.l.bf16 %v1976
      %v1980 = vunpack.c.h.bf16 %v1972
      %v1981 = vunpack.c.h.bf16 %v1976
      %v1982 = vmul.f32 %v1978, %v663
      %v1983 = vmul.f32 %v1979, %v664
      %v1984 = vmul.f32 %v1980, %v663
      %v1985 = vmul.f32 %v1981, %v664
      %v1986 = vpack.c.bf16 %v1983, %v1982
      %v1987 = vpack.c.bf16 %v1985, %v1984
      %1988 = vrot.lane.b32.xlu0 %v1879, 113
      %v1989 = vpop.permute.xlu0 %1988
      %1990 = vrot.lane.b32.xlu0 %v1874, 113
      %v1991 = vpop.permute.xlu0 %1990
      %v1992 = vsel %vm675, %v1989, %v1991
      %v1996 = vsel %vm678, %v1991, %v1989
      %v1998 = vunpack.c.l.bf16 %v1992
      %v1999 = vunpack.c.l.bf16 %v1996
      %v2000 = vunpack.c.h.bf16 %v1992
      %v2001 = vunpack.c.h.bf16 %v1996
      %v2002 = vmul.f32 %v1998, %v689
      %v2003 = vmul.f32 %v1999, %v690
      %v2004 = vmul.f32 %v2000, %v689
      %v2005 = vmul.f32 %v2001, %v690
      %v2006 = vpack.c.bf16 %v2003, %v2002
      %v2007 = vpack.c.bf16 %v2005, %v2004
      %2008 = vrot.lane.b32.xlu0 %v1879, 112
      %v2009 = vpop.permute.xlu0 %2008
      %2010 = vrot.lane.b32.xlu0 %v1874, 112
      %v2011 = vpop.permute.xlu0 %2010
      %v2012 = vsel %vm701, %v2009, %v2011
      %v2016 = vsel %vm704, %v2011, %v2009
      %v2018 = vunpack.c.l.bf16 %v2012
      %v2019 = vunpack.c.l.bf16 %v2016
      %v2020 = vunpack.c.h.bf16 %v2012
      %v2021 = vunpack.c.h.bf16 %v2016
      %v2022 = vmul.f32 %v2018, %v715
      %v2023 = vmul.f32 %v2019, %v716
      %v2024 = vmul.f32 %v2020, %v715
      %v2025 = vmul.f32 %v2021, %v716
      %v2026 = vpack.c.bf16 %v2023, %v2022
      %v2027 = vpack.c.bf16 %v2025, %v2024
      %2028 = vrot.lane.b32.xlu0 %v1879, 111
      %v2029 = vpop.permute.xlu0 %2028
      %2030 = vrot.lane.b32.xlu0 %v1874, 111
      %v2031 = vpop.permute.xlu0 %2030
      %v2032 = vsel %vm727, %v2029, %v2031
      %v2036 = vsel %vm730, %v2031, %v2029
      %v2038 = vunpack.c.l.bf16 %v2032
      %v2039 = vunpack.c.l.bf16 %v2036
      %v2040 = vunpack.c.h.bf16 %v2032
      %v2041 = vunpack.c.h.bf16 %v2036
      %v2042 = vmul.f32 %v2038, %v752
      %v2043 = vmul.f32 %v2039, %v753
      %v2044 = vmul.f32 %v2040, %v752
      %v2045 = vmul.f32 %v2041, %v753
      %v2046 = vpack.c.bf16 %v2043, %v2042
      %v2047 = vpack.c.bf16 %v2045, %v2044
      %v2050 = vunpack.c.l.b16 %v1896
      %v2051 = vunpack.c.h.b16 %v1896
      %v2052 = vunpack.c.l.b16 %v1897
      %v2053 = vunpack.c.h.b16 %v1897
      %v2054 = vpack.c.b16 %v2052, %v2050
      %v2055 = vpack.c.b16 %v2053, %v2051
      %v2058 = vunpack.c.l.b16 %v1916
      %v2059 = vunpack.c.h.b16 %v1916
      %v2060 = vunpack.c.l.b16 %v1917
      %v2061 = vunpack.c.h.b16 %v1917
      %v2062 = vpack.c.b16 %v2060, %v2058
      %v2063 = vpack.c.b16 %v2061, %v2059
      %v2064 = vrot.slane %v2062, 2
      %v2065 = vrot.slane %v2063, 2
      %v2068 = vunpack.c.l.b16 %v1936
      %v2069 = vunpack.c.h.b16 %v1936
      %v2070 = vunpack.c.l.b16 %v1937
      %v2071 = vunpack.c.h.b16 %v1937
      %v2072 = vpack.c.b16 %v2068, %v2068
      %v2073 = vpack.c.b16 %v2069, %v2069
      %v2074 = vpack.c.b16 %v2070, %v2070
      %v2075 = vpack.c.b16 %v2071, %v2071
      %v2078 = vunpack.c.l.b16 %v1956
      %v2079 = vunpack.c.h.b16 %v1956
      %v2080 = vunpack.c.l.b16 %v1957
      %v2081 = vunpack.c.h.b16 %v1957
      %v2082 = vpack.c.b16 %v2080, %v2078
      %v2083 = vpack.c.b16 %v2081, %v2079
      %v2084 = vrot.slane %v2082, 6
      %v2085 = vrot.slane %v2083, 6
      %v2088 = vunpack.c.l.b16 %v1966
      %v2089 = vunpack.c.h.b16 %v1966
      %v2090 = vunpack.c.l.b16 %v1967
      %v2091 = vunpack.c.h.b16 %v1967
      %v2092 = vpack.c.b16 %v2090, %v2088
      %v2093 = vpack.c.b16 %v2091, %v2089
      %v2096 = vunpack.c.l.b16 %v1986
      %v2097 = vunpack.c.h.b16 %v1986
      %v2098 = vunpack.c.l.b16 %v1987
      %v2099 = vunpack.c.h.b16 %v1987
      %v2100 = vpack.c.b16 %v2098, %v2096
      %v2101 = vpack.c.b16 %v2099, %v2097
      %v2102 = vrot.slane %v2100, 2
      %v2103 = vrot.slane %v2101, 2
      %v2106 = vunpack.c.l.b16 %v2006
      %v2107 = vunpack.c.h.b16 %v2006
      %v2108 = vunpack.c.l.b16 %v2007
      %v2109 = vunpack.c.h.b16 %v2007
      %v2110 = vpack.c.b16 %v2106, %v2106
      %v2111 = vpack.c.b16 %v2107, %v2107
      %v2112 = vpack.c.b16 %v2108, %v2108
      %v2113 = vpack.c.b16 %v2109, %v2109
      %v2116 = vunpack.c.l.b16 %v2026
      %v2117 = vunpack.c.h.b16 %v2026
      %v2118 = vunpack.c.l.b16 %v2027
      %v2119 = vunpack.c.h.b16 %v2027
      %v2120 = vpack.c.b16 %v2118, %v2116
      %v2121 = vpack.c.b16 %v2119, %v2117
      %v2122 = vrot.slane %v2120, 6
      %v2123 = vrot.slane %v2121, 6
      %v2126 = vunpack.c.l.b16 %v2046
      %v2127 = vunpack.c.h.b16 %v2046
      %v2128 = vunpack.c.l.b16 %v2047
      %v2129 = vunpack.c.h.b16 %v2047
      %v2130 = vpack.c.b16 %v2128, %v2126
      %v2131 = vpack.c.b16 %v2129, %v2127
      %v2134 = vsel %vm844, %v2054, %v2064
      %v2138 = vsel %vm844, %v2055, %v2065
      %v2141 = vsel %vm497, %v2064, %v2072
      %v2144 = vsel %vm497, %v2065, %v2073
      %v2148 = vsel %vm859, %v2074, %v2084
      %v2152 = vsel %vm859, %v2075, %v2085
      %v2156 = vsel %vm844, %v2092, %v2102
      %v2160 = vsel %vm844, %v2093, %v2103
      %v2163 = vsel %vm497, %v2102, %v2110
      %v2166 = vsel %vm497, %v2103, %v2111
      %v2170 = vsel %vm859, %v2112, %v2122
      %v2174 = vsel %vm859, %v2113, %v2123
      %v2177 = vsel %vm844, %v2130, 0
      %v2180 = vsel %vm844, %v2131, 0
      %2182 = vmatpush.bf16.msra.mxu0 0
      %2183 = vmatpush.bf16.msra.mxu0 %v2177
      %2184 = vmatpush.bf16.msra.mxu0 %v2170
      %2185 = vmatpush.bf16.msra.mxu0 %v2163
      %2186 = vmatpush.bf16.msra.mxu0 %v2156
      %2187 = vmatpush.bf16.msra.mxu0 %v2148
      %2188 = vmatpush.bf16.msra.mxu0 %v2141
      %2189 = vmatpush.bf16.msra.mxu0 %v2134
      %2190 = vmatmul.bf16.gmra.mxu0 %v897
      %v2191 = vpop.f32.mrf.mxu0
      %v2192 = vadd.f32 %v893, %v2191
      %v2193 = vpop.f32.mrf.mxu0
      %2194 = vdwg.mxu0
      %2195 = vmatpush.bf16.msra.mxu0 0
      %2196 = vmatpush.bf16.msra.mxu0 %v2180
      %2197 = vmatpush.bf16.msra.mxu0 %v2174
      %2198 = vmatpush.bf16.msra.mxu0 %v2166
      %2199 = vmatpush.bf16.msra.mxu0 %v2160
      %2200 = vmatpush.bf16.msra.mxu0 %v2152
      %2201 = vmatpush.bf16.msra.mxu0 %v2144
      %2202 = vmatpush.bf16.msra.mxu0 %v2138
      %2203 = vmatmul.bf16.gmra.mxu0 %v897
      %v2204 = vpop.f32.mrf.mxu0
      %v2205 = vadd.f32 %v893, %v2204
      %v2206 = vpop.f32.mrf.mxu0
      %2207 = vdwg.mxu0
      %v2208 = vmax.f32 %v2192, 0.0
      %v2209 = vmax.f32 %v2205, 0.0
      %s2210 = scalar_lea.vmem %s248, 48
      %2211 = vst [vmem:[%s2210] sm:$0xff] %v2208
      %2212 = vst [vmem:[%s2210 + $0x8] sm:$0xff] %v2209
      %s2213 = smul.u32 4, %s21
      %p2214 = scmp.lt.s32.totalorder %s20, 1
      %s2215 = scalar_select %p2214, %s20, 1
      %p2216 = scmp.lt.s32.totalorder %s2213, 15
      %s2217 = scalar_select %p2216, %s2213, 15
      %s2218 = smul.addr %s2217, 2
      %s2219 = smul.addr %s2215, 32
      %s2220 = sadd.s32 %s2218, %s2219
      %s2221 = smul.addr %s2220, 8
      %s2222 = scalar_lea.vmem %s5, %s2221
      // Predicated region
      $region41: #{upconv_forward.1} parent=39 // pred_check
        %p2223 = pneg %p158
      $region42: #{upconv_forward.1} parent=39 // pred_check_branch
        %2225 = sbr.rel (%p2223) target = $region44
      $region43: #{upconv_forward.1} parent=39 // pred_region
        %s2226 = smul.u32 4, %s21
      $region44: #{upconv_forward.1} parent=39 // pred_fallthru
        _
    $region40: #{upconv_forward.1} parent=5 // pred_fallthru
      _
    %p2227 = scmp.le.s32.totalorder 2, %s11
    // Predicated region
    $region45: #{upconv_forward.1} parent=5 // pred_check
      %p2228 = pneg %p2227
    $region46: #{upconv_forward.1} parent=5 // pred_check_branch
      %2230 = sbr.rel (%p2228) target = $region48
    $region47: #{upconv_forward.1} parent=5 // pred_region
      %s2231 = ssub.s32 %s11, 2
      // Predicated region
      $region49: #{upconv_forward.1} parent=47 // pred_check
        %p2232 = pneg %p164
      $region50: #{upconv_forward.1} parent=47 // pred_check_branch
        %2234 = sbr.rel (%p2232) target = $region52
      $region51: #{upconv_forward.1} parent=47 // pred_region
        %s2235 = smul.u32 4, %s23
        %p2236 = scmp.lt.s32.totalorder %s22, 1
        %s2237 = scalar_select %p2236, %s22, 1
        %p2238 = scmp.lt.s32.totalorder %s2235, 15
        %s2239 = scalar_select %p2238, %s2235, 15
        %s2240 = smul.addr %s2239, 2
        %s2241 = smul.addr %s2237, 32
        %s2242 = sadd.s32 %s2240, %s2241
        %s2243 = smul.addr %s2242, 8
        %s2244 = scalar_lea.vmem %s5, %s2243
      $region52: #{upconv_forward.1} parent=47 // pred_fallthru
        _
    $region48: #{upconv_forward.1} parent=5 // pred_fallthru
      _
  $region6: #{upconv_forward.1} parent=0 // loop_footer
    %s15 = sadd.s32 1, %s11
  $region7: #{upconv_forward.1} parent=0 // loop_footer_branch
    %10 = sbr.rel target = $region3
  $region8: #{upconv_forward.1} parent=0 // loop_exit
    _

</llo_original>
